<compile_context>
chip_gen: v5e
topology: v5e:2x2
jax: 0.10.0
libtpu: 0.0.40
codegen_flags: <defaults>
</compile_context>

<pallas_src>
import functools

import numpy as np
import jax
import jax.numpy as jnp
from jax import lax
from jax.experimental import pallas as pl
from jax.experimental.pallas import tpu as pltpu


# ----------------------------------------------------------------------------
# Trace-time helpers (pure numpy -> baked constants)
# ----------------------------------------------------------------------------
def _boundary_masks(H, W, K):
    """(K*K, H*W) f32 0/1 masks.

    Entry [kh*K + kw, h*W + w] is 1 iff the source pixel (h+kh-p, w+kw-p)
    lies inside the image, with p = (K-1)//2 (i.e. SAME zero padding).
    """
    p = (K - 1) // 2
    r = np.arange(H * W)
    h, w = r // W, r % W
    rows = []
    for kh in range(K):
        for kw in range(K):
            dh, dw = kh - p, kw - p
            valid = (h + dh >= 0) & (h + dh < H) & (w + dw >= 0) & (w + dw < W)
            rows.append(valid.astype(np.float32))
    return np.stack(rows, axis=0)


# ----------------------------------------------------------------------------
# Fused SFE kernel: conv5x5 + LeakyReLU + conv3x3 + LeakyReLU per image
# ----------------------------------------------------------------------------
def _sfe_kernel(x_ref, w1_ref, b1_ref, w2_ref, b2_ref, m5_ref, m3_ref, o_ref,
                *, H, W, alpha, nb):
    HW = H * W

    def leaky(v):
        return jnp.where(v >= 0.0, v, alpha * v)

    def conv(v, w_ref, b_ref, m_ref, K):
        # v: (C, HW) f32.  Build colT = (K*K*C, HW) from lane rolls + masks,
        # then ONE MXU matmul: (Cout, K*K*C) @ (K*K*C, HW) -> (Cout, HW).
        p = (K - 1) // 2
        pieces = []
        for kh in range(K):
            for kw in range(K):
                delta = (kh - p) * W + (kw - p)        # flat source offset
                if delta == 0:
                    shifted = v
                else:
                    # shifted[c, r] = v[c, (r + delta) mod HW]   (XLU lane roll)
                    shifted = pltpu.roll(v, shift=(-delta) % HW, axis=1)
                mask = m_ref[pl.ds(kh * K + kw, 1), :]  # (1, HW) 0/1 f32
                pieces.append(shifted * mask)           # zero out-of-image taps
        colT = jnp.concatenate(pieces, axis=0)          # (K*K*C, HW)
        y = jnp.dot(w_ref[...], colT, preferred_element_type=jnp.float32)
        return leaky(y + b_ref[...])                    # bias + LeakyReLU (f32)

    for n in range(nb):                                 # static unroll over images
        x = x_ref[n]                                    # (Cin_p, HW) f32
        y1 = conv(x, w1_ref, b1_ref, m5_ref, 5)         # (Cout, HW)
        y2 = conv(y1, w2_ref, b2_ref, m3_ref, 3)        # (Cout, HW)
        o_ref[n] = y2.astype(o_ref.dtype)               # lane-dense store


# ----------------------------------------------------------------------------
# Wrapper (PyTorch layouts: NCHW activations, OIHW weights)
# ----------------------------------------------------------------------------
def sfe_forward(x, w1, b1, w2, b2, *, alpha=0.1, images_per_step=1):
    """SFE forward.  x: (B,Cin,H,W); w1: (Cout,Cin,5,5); w2: (Cout,Cout,3,3)."""
    B, Cin, H, W = x.shape
    Cout, Cin_w, k1h, k1w = w1.shape
    assert (Cin_w, k1h, k1w) == (Cin, 5, 5)
    assert w2.shape == (Cout, Cout, 3, 3)
    HW = H * W
    nb = images_per_step
    assert B % nb == 0, "images_per_step must divide the batch"

    # Pad input channels to a sublane multiple (4 -> 8): clean 8-row im2col tiles.
    cin_p = max(8, ((Cin + 7) // 8) * 8)

    x_flat = x.astype(jnp.float32).reshape(B, Cin, HW)
    if cin_p != Cin:
        x_flat = jnp.pad(x_flat, ((0, 0), (0, cin_p - Cin), (0, 0)))

    # Resident weights laid out to match the in-kernel column order:
    #   col row index = (kh*K + kw) * C + c    <->   w[o, c, kh, kw]
    w1p = jnp.pad(w1.astype(jnp.float32),
                  ((0, 0), (0, cin_p - Cin), (0, 0), (0, 0)))
    w1t = jnp.transpose(w1p, (0, 2, 3, 1)).reshape(Cout, 25 * cin_p)
    w2t = jnp.transpose(w2.astype(jnp.float32), (0, 2, 3, 1)).reshape(Cout, 9 * Cout)
    b1c = b1.astype(jnp.float32).reshape(Cout, 1)
    b2c = b2.astype(jnp.float32).reshape(Cout, 1)

    m5 = jnp.asarray(_boundary_masks(H, W, 5))          # (25, HW) constant
    m3 = jnp.asarray(_boundary_masks(H, W, 3))          # (9,  HW) constant

    kernel = functools.partial(_sfe_kernel, H=H, W=W, alpha=alpha, nb=nb)

    flops = 2 * B * HW * Cout * (25 * cin_p + 9 * Cout)
    bytes_accessed = 4 * (x_flat.size + B * Cout * HW + w1t.size + w2t.size
                          + b1c.size + b2c.size + m5.size + m3.size)

    out_flat = pl.pallas_call(
        kernel,
        out_shape=jax.ShapeDtypeStruct((B, Cout, HW), jnp.float32),
        grid=(B // nb,),
        in_specs=[
            pl.BlockSpec((nb, cin_p, HW), lambda i: (i, 0, 0)),   # per-step images
            pl.BlockSpec((Cout, 25 * cin_p), lambda i: (0, 0)),   # resident
            pl.BlockSpec((Cout, 1), lambda i: (0, 0)),            # resident
            pl.BlockSpec((Cout, 9 * Cout), lambda i: (0, 0)),     # resident
            pl.BlockSpec((Cout, 1), lambda i: (0, 0)),            # resident
            pl.BlockSpec((25, HW), lambda i: (0, 0)),             # resident
            pl.BlockSpec((9, HW), lambda i: (0, 0)),              # resident
        ],
        out_specs=pl.BlockSpec((nb, Cout, HW), lambda i: (i, 0, 0)),
        compiler_params=pltpu.CompilerParams(
            dimension_semantics=("parallel",),
            vmem_limit_bytes=32 * 1024 * 1024),
        cost_estimate=pl.CostEstimate(flops=flops, transcendentals=0,
                                      bytes_accessed=bytes_accessed),
    )(x_flat, w1t, b1c, w2t, b2c, m5, m3)

    return out_flat.reshape(B, Cout, H, W).astype(x.dtype)


# ----------------------------------------------------------------------------
# Pure-JAX reference (for correctness check)
# ----------------------------------------------------------------------------
def sfe_reference(x, w1, b1, w2, b2, alpha=0.1):
    dn = ("NCHW", "OIHW", "NCHW")
    y = lax.conv_general_dilated(x, w1, (1, 1), [(2, 2), (2, 2)],
                                 dimension_numbers=dn,
                                 precision=lax.Precision.HIGHEST)
    y = y + b1.reshape(1, -1, 1, 1)
    y = jnp.where(y >= 0, y, alpha * y)
    z = lax.conv_general_dilated(y, w2, (1, 1), [(1, 1), (1, 1)],
                                 dimension_numbers=dn,
                                 precision=lax.Precision.HIGHEST)
    z = z + b2.reshape(1, -1, 1, 1)
    return jnp.where(z >= 0, z, alpha * z)


# ----------------------------------------------------------------------------
if __name__ == "__main__":
    # SFE-consistent small shapes: inChannels=4, outChannels=32, 16x16 images.
    B, Cin, Cout, H, W = 2, 4, 32, 16, 16

    key = jax.random.PRNGKey(0)
    kx, kw1, kb1, kw2, kb2 = jax.random.split(key, 5)

    x = jax.random.normal(kx, (B, Cin, H, W), dtype=jnp.float32)
    w1 = (0.1 * jax.random.normal(kw1, (Cout, Cin, 5, 5))).astype(jnp.float32)
    b1 = (0.01 * jax.random.normal(kb1, (Cout,))).astype(jnp.float32)
    w2 = (0.1 * jax.random.normal(kw2, (Cout, Cout, 3, 3))).astype(jnp.float32)
    b2 = (0.01 * jax.random.normal(kb2, (Cout,))).astype(jnp.float32)

    out = jax.jit(sfe_forward)(x, w1, b1, w2, b2)
    jax.block_until_ready(out)

    assert out.shape == (B, Cout, H, W)
    assert bool(jnp.all(jnp.isfinite(out)))

    ref = sfe_reference(x, w1, b1, w2, b2)
    max_err = float(jnp.max(jnp.abs(out - ref)))
    assert max_err < 5e-2, f"max abs err vs reference = {max_err}"

    print("KERNEL_OK")
</pallas_src>

<mosaic_0001>
module attributes {stable_mosaic.version = 11 : i64} {
  func.func @_sfe_kernel(%arg0: i32, %arg1: memref<1x8x256xf32, #tpu.memory_space<vmem>>, %arg2: memref<32x200xf32, #tpu.memory_space<vmem>>, %arg3: memref<32x1xf32, #tpu.memory_space<vmem>>, %arg4: memref<32x288xf32, #tpu.memory_space<vmem>>, %arg5: memref<32x1xf32, #tpu.memory_space<vmem>>, %arg6: memref<25x256xf32, #tpu.memory_space<vmem>>, %arg7: memref<9x256xf32, #tpu.memory_space<vmem>>, %arg8: memref<1x32x256xf32, #tpu.memory_space<vmem>>) attributes {dimension_semantics = [#tpu.dimension_semantics<parallel>], iteration_bounds = array<i64: 2>, scalar_prefetch = 0 : i64, scratch_operands = 0 : i64, tpu.core_type = #tpu.core_type<tc>, window_params = [{transform_indices = @transform_0, window_bounds = array<i64: 1, 8, 256>}, {pipeline_mode = #tpu.pipeline_mode<synchronous>, transform_indices = @transform_1, window_bounds = array<i64: 32, 200>}, {pipeline_mode = #tpu.pipeline_mode<synchronous>, transform_indices = @transform_2, window_bounds = array<i64: 32, 1>}, {pipeline_mode = #tpu.pipeline_mode<synchronous>, transform_indices = @transform_3, window_bounds = array<i64: 32, 288>}, {pipeline_mode = #tpu.pipeline_mode<synchronous>, transform_indices = @transform_4, window_bounds = array<i64: 32, 1>}, {pipeline_mode = #tpu.pipeline_mode<synchronous>, transform_indices = @transform_5, window_bounds = array<i64: 25, 256>}, {pipeline_mode = #tpu.pipeline_mode<synchronous>, transform_indices = @transform_6, window_bounds = array<i64: 9, 256>}, {transform_indices = @transform_7, window_bounds = array<i64: 1, 32, 256>}]} {
    %c0 = arith.constant 0 : index
    %c0_0 = arith.constant 0 : index
    %c0_1 = arith.constant 0 : index
    %0 = vector.load %arg1[%c0, %c0_0, %c0_1] : memref<1x8x256xf32, #tpu.memory_space<vmem>>, vector<1x8x256xf32>
    %1 = vector.shape_cast %0 : vector<1x8x256xf32> to vector<8x256xf32>
    %c34_i32 = arith.constant 34 : i32
    %2 = tpu.dynamic_rotate %1 by %c34_i32 dim 1 : vector<8x256xf32>, i32 -> vector<8x256xf32>
    %c0_2 = arith.constant 0 : index
    %c0_3 = arith.constant 0 : index
    %3 = vector.load %arg6[%c0_2, %c0_3] : memref<25x256xf32, #tpu.memory_space<vmem>>, vector<1x256xf32>
    %4 = vector.broadcast %3 : vector<1x256xf32> to vector<8x256xf32>
    %5 = arith.mulf %2, %4 : vector<8x256xf32>
    %c33_i32 = arith.constant 33 : i32
    %6 = tpu.dynamic_rotate %1 by %c33_i32 dim 1 : vector<8x256xf32>, i32 -> vector<8x256xf32>
    %c1 = arith.constant 1 : index
    %c0_4 = arith.constant 0 : index
    %7 = vector.load %arg6[%c1, %c0_4] : memref<25x256xf32, #tpu.memory_space<vmem>>, vector<1x256xf32>
    %8 = vector.broadcast %7 : vector<1x256xf32> to vector<8x256xf32>
    %9 = arith.mulf %6, %8 : vector<8x256xf32>
    %c32_i32 = arith.constant 32 : i32
    %10 = tpu.dynamic_rotate %1 by %c32_i32 dim 1 : vector<8x256xf32>, i32 -> vector<8x256xf32>
    %c2 = arith.constant 2 : index
    %c0_5 = arith.constant 0 : index
    %11 = vector.load %arg6[%c2, %c0_5] : memref<25x256xf32, #tpu.memory_space<vmem>>, vector<1x256xf32>
    %12 = vector.broadcast %11 : vector<1x256xf32> to vector<8x256xf32>
    %13 = arith.mulf %10, %12 : vector<8x256xf32>
    %c31_i32 = arith.constant 31 : i32
    %14 = tpu.dynamic_rotate %1 by %c31_i32 dim 1 : vector<8x256xf32>, i32 -> vector<8x256xf32>
    %c3 = arith.constant 3 : index
    %c0_6 = arith.constant 0 : index
    %15 = vector.load %arg6[%c3, %c0_6] : memref<25x256xf32, #tpu.memory_space<vmem>>, vector<1x256xf32>
    %16 = vector.broadcast %15 : vector<1x256xf32> to vector<8x256xf32>
    %17 = arith.mulf %14, %16 : vector<8x256xf32>
    %c30_i32 = arith.constant 30 : i32
    %18 = tpu.dynamic_rotate %1 by %c30_i32 dim 1 : vector<8x256xf32>, i32 -> vector<8x256xf32>
    %c4 = arith.constant 4 : index
    %c0_7 = arith.constant 0 : index
    %19 = vector.load %arg6[%c4, %c0_7] : memref<25x256xf32, #tpu.memory_space<vmem>>, vector<1x256xf32>
    %20 = vector.broadcast %19 : vector<1x256xf32> to vector<8x256xf32>
    %21 = arith.mulf %18, %20 : vector<8x256xf32>
    %c18_i32 = arith.constant 18 : i32
    %22 = tpu.dynamic_rotate %1 by %c18_i32 dim 1 : vector<8x256xf32>, i32 -> vector<8x256xf32>
    %c5 = arith.constant 5 : index
    %c0_8 = arith.constant 0 : index
    %23 = vector.load %arg6[%c5, %c0_8] : memref<25x256xf32, #tpu.memory_space<vmem>>, vector<1x256xf32>
    %24 = vector.broadcast %23 : vector<1x256xf32> to vector<8x256xf32>
    %25 = arith.mulf %22, %24 : vector<8x256xf32>
    %c17_i32 = arith.constant 17 : i32
    %26 = tpu.dynamic_rotate %1 by %c17_i32 dim 1 : vector<8x256xf32>, i32 -> vector<8x256xf32>
    %c6 = arith.constant 6 : index
    %c0_9 = arith.constant 0 : index
    %27 = vector.load %arg6[%c6, %c0_9] : memref<25x256xf32, #tpu.memory_space<vmem>>, vector<1x256xf32>
    %28 = vector.broadcast %27 : vector<1x256xf32> to vector<8x256xf32>
    %29 = arith.mulf %26, %28 : vector<8x256xf32>
    %c16_i32 = arith.constant 16 : i32
    %30 = tpu.dynamic_rotate %1 by %c16_i32 dim 1 : vector<8x256xf32>, i32 -> vector<8x256xf32>
    %c7 = arith.constant 7 : index
    %c0_10 = arith.constant 0 : index
    %31 = vector.load %arg6[%c7, %c0_10] : memref<25x256xf32, #tpu.memory_space<vmem>>, vector<1x256xf32>
    %32 = vector.broadcast %31 : vector<1x256xf32> to vector<8x256xf32>
    %33 = arith.mulf %30, %32 : vector<8x256xf32>
    %c15_i32 = arith.constant 15 : i32
    %34 = tpu.dynamic_rotate %1 by %c15_i32 dim 1 : vector<8x256xf32>, i32 -> vector<8x256xf32>
    %c8 = arith.constant 8 : index
    %c0_11 = arith.constant 0 : index
    %35 = vector.load %arg6[%c8, %c0_11] : memref<25x256xf32, #tpu.memory_space<vmem>>, vector<1x256xf32>
    %36 = vector.broadcast %35 : vector<1x256xf32> to vector<8x256xf32>
    %37 = arith.mulf %34, %36 : vector<8x256xf32>
    %c14_i32 = arith.constant 14 : i32
    %38 = tpu.dynamic_rotate %1 by %c14_i32 dim 1 : vector<8x256xf32>, i32 -> vector<8x256xf32>
    %c9 = arith.constant 9 : index
    %c0_12 = arith.constant 0 : index
    %39 = vector.load %arg6[%c9, %c0_12] : memref<25x256xf32, #tpu.memory_space<vmem>>, vector<1x256xf32>
    %40 = vector.broadcast %39 : vector<1x256xf32> to vector<8x256xf32>
    %41 = arith.mulf %38, %40 : vector<8x256xf32>
    %c2_i32 = arith.constant 2 : i32
    %42 = tpu.dynamic_rotate %1 by %c2_i32 dim 1 : vector<8x256xf32>, i32 -> vector<8x256xf32>
    %c10 = arith.constant 10 : index
    %c0_13 = arith.constant 0 : index
    %43 = vector.load %arg6[%c10, %c0_13] : memref<25x256xf32, #tpu.memory_space<vmem>>, vector<1x256xf32>
    %44 = vector.broadcast %43 : vector<1x256xf32> to vector<8x256xf32>
    %45 = arith.mulf %42, %44 : vector<8x256xf32>
    %c1_i32 = arith.constant 1 : i32
    %46 = tpu.dynamic_rotate %1 by %c1_i32 dim 1 : vector<8x256xf32>, i32 -> vector<8x256xf32>
    %c11 = arith.constant 11 : index
    %c0_14 = arith.constant 0 : index
    %47 = vector.load %arg6[%c11, %c0_14] : memref<25x256xf32, #tpu.memory_space<vmem>>, vector<1x256xf32>
    %48 = vector.broadcast %47 : vector<1x256xf32> to vector<8x256xf32>
    %49 = arith.mulf %46, %48 : vector<8x256xf32>
    %c12 = arith.constant 12 : index
    %c0_15 = arith.constant 0 : index
    %50 = vector.load %arg6[%c12, %c0_15] : memref<25x256xf32, #tpu.memory_space<vmem>>, vector<1x256xf32>
    %51 = vector.broadcast %50 : vector<1x256xf32> to vector<8x256xf32>
    %52 = arith.mulf %1, %51 : vector<8x256xf32>
    %c255_i32 = arith.constant 255 : i32
    %53 = tpu.dynamic_rotate %1 by %c255_i32 dim 1 : vector<8x256xf32>, i32 -> vector<8x256xf32>
    %c13 = arith.constant 13 : index
    %c0_16 = arith.constant 0 : index
    %54 = vector.load %arg6[%c13, %c0_16] : memref<25x256xf32, #tpu.memory_space<vmem>>, vector<1x256xf32>
    %55 = vector.broadcast %54 : vector<1x256xf32> to vector<8x256xf32>
    %56 = arith.mulf %53, %55 : vector<8x256xf32>
    %c254_i32 = arith.constant 254 : i32
    %57 = tpu.dynamic_rotate %1 by %c254_i32 dim 1 : vector<8x256xf32>, i32 -> vector<8x256xf32>
    %c14 = arith.constant 14 : index
    %c0_17 = arith.constant 0 : index
    %58 = vector.load %arg6[%c14, %c0_17] : memref<25x256xf32, #tpu.memory_space<vmem>>, vector<1x256xf32>
    %59 = vector.broadcast %58 : vector<1x256xf32> to vector<8x256xf32>
    %60 = arith.mulf %57, %59 : vector<8x256xf32>
    %c242_i32 = arith.constant 242 : i32
    %61 = tpu.dynamic_rotate %1 by %c242_i32 dim 1 : vector<8x256xf32>, i32 -> vector<8x256xf32>
    %c15 = arith.constant 15 : index
    %c0_18 = arith.constant 0 : index
    %62 = vector.load %arg6[%c15, %c0_18] : memref<25x256xf32, #tpu.memory_space<vmem>>, vector<1x256xf32>
    %63 = vector.broadcast %62 : vector<1x256xf32> to vector<8x256xf32>
    %64 = arith.mulf %61, %63 : vector<8x256xf32>
    %c241_i32 = arith.constant 241 : i32
    %65 = tpu.dynamic_rotate %1 by %c241_i32 dim 1 : vector<8x256xf32>, i32 -> vector<8x256xf32>
    %c16 = arith.constant 16 : index
    %c0_19 = arith.constant 0 : index
    %66 = vector.load %arg6[%c16, %c0_19] : memref<25x256xf32, #tpu.memory_space<vmem>>, vector<1x256xf32>
    %67 = vector.broadcast %66 : vector<1x256xf32> to vector<8x256xf32>
    %68 = arith.mulf %65, %67 : vector<8x256xf32>
    %c240_i32 = arith.constant 240 : i32
    %69 = tpu.dynamic_rotate %1 by %c240_i32 dim 1 : vector<8x256xf32>, i32 -> vector<8x256xf32>
    %c17 = arith.constant 17 : index
    %c0_20 = arith.constant 0 : index
    %70 = vector.load %arg6[%c17, %c0_20] : memref<25x256xf32, #tpu.memory_space<vmem>>, vector<1x256xf32>
    %71 = vector.broadcast %70 : vector<1x256xf32> to vector<8x256xf32>
    %72 = arith.mulf %69, %71 : vector<8x256xf32>
    %c239_i32 = arith.constant 239 : i32
    %73 = tpu.dynamic_rotate %1 by %c239_i32 dim 1 : vector<8x256xf32>, i32 -> vector<8x256xf32>
    %c18 = arith.constant 18 : index
    %c0_21 = arith.constant 0 : index
    %74 = vector.load %arg6[%c18, %c0_21] : memref<25x256xf32, #tpu.memory_space<vmem>>, vector<1x256xf32>
    %75 = vector.broadcast %74 : vector<1x256xf32> to vector<8x256xf32>
    %76 = arith.mulf %73, %75 : vector<8x256xf32>
    %c238_i32 = arith.constant 238 : i32
    %77 = tpu.dynamic_rotate %1 by %c238_i32 dim 1 : vector<8x256xf32>, i32 -> vector<8x256xf32>
    %c19 = arith.constant 19 : index
    %c0_22 = arith.constant 0 : index
    %78 = vector.load %arg6[%c19, %c0_22] : memref<25x256xf32, #tpu.memory_space<vmem>>, vector<1x256xf32>
    %79 = vector.broadcast %78 : vector<1x256xf32> to vector<8x256xf32>
    %80 = arith.mulf %77, %79 : vector<8x256xf32>
    %c226_i32 = arith.constant 226 : i32
    %81 = tpu.dynamic_rotate %1 by %c226_i32 dim 1 : vector<8x256xf32>, i32 -> vector<8x256xf32>
    %c20 = arith.constant 20 : index
    %c0_23 = arith.constant 0 : index
    %82 = vector.load %arg6[%c20, %c0_23] : memref<25x256xf32, #tpu.memory_space<vmem>>, vector<1x256xf32>
    %83 = vector.broadcast %82 : vector<1x256xf32> to vector<8x256xf32>
    %84 = arith.mulf %81, %83 : vector<8x256xf32>
    %c225_i32 = arith.constant 225 : i32
    %85 = tpu.dynamic_rotate %1 by %c225_i32 dim 1 : vector<8x256xf32>, i32 -> vector<8x256xf32>
    %c21 = arith.constant 21 : index
    %c0_24 = arith.constant 0 : index
    %86 = vector.load %arg6[%c21, %c0_24] : memref<25x256xf32, #tpu.memory_space<vmem>>, vector<1x256xf32>
    %87 = vector.broadcast %86 : vector<1x256xf32> to vector<8x256xf32>
    %88 = arith.mulf %85, %87 : vector<8x256xf32>
    %c224_i32 = arith.constant 224 : i32
    %89 = tpu.dynamic_rotate %1 by %c224_i32 dim 1 : vector<8x256xf32>, i32 -> vector<8x256xf32>
    %c22 = arith.constant 22 : index
    %c0_25 = arith.constant 0 : index
    %90 = vector.load %arg6[%c22, %c0_25] : memref<25x256xf32, #tpu.memory_space<vmem>>, vector<1x256xf32>
    %91 = vector.broadcast %90 : vector<1x256xf32> to vector<8x256xf32>
    %92 = arith.mulf %89, %91 : vector<8x256xf32>
    %c223_i32 = arith.constant 223 : i32
    %93 = tpu.dynamic_rotate %1 by %c223_i32 dim 1 : vector<8x256xf32>, i32 -> vector<8x256xf32>
    %c23 = arith.constant 23 : index
    %c0_26 = arith.constant 0 : index
    %94 = vector.load %arg6[%c23, %c0_26] : memref<25x256xf32, #tpu.memory_space<vmem>>, vector<1x256xf32>
    %95 = vector.broadcast %94 : vector<1x256xf32> to vector<8x256xf32>
    %96 = arith.mulf %93, %95 : vector<8x256xf32>
    %c222_i32 = arith.constant 222 : i32
    %97 = tpu.dynamic_rotate %1 by %c222_i32 dim 1 : vector<8x256xf32>, i32 -> vector<8x256xf32>
    %c24 = arith.constant 24 : index
    %c0_27 = arith.constant 0 : index
    %98 = vector.load %arg6[%c24, %c0_27] : memref<25x256xf32, #tpu.memory_space<vmem>>, vector<1x256xf32>
    %99 = vector.broadcast %98 : vector<1x256xf32> to vector<8x256xf32>
    %100 = arith.mulf %97, %99 : vector<8x256xf32>
    %101 = tpu.concatenate %5, %9, %13, %17, %21, %25, %29, %33, %37, %41, %45, %49, %52, %56, %60, %64 in 0 : vector<8x256xf32>, vector<8x256xf32>, vector<8x256xf32>, vector<8x256xf32>, vector<8x256xf32>, vector<8x256xf32>, vector<8x256xf32>, vector<8x256xf32>, vector<8x256xf32>, vector<8x256xf32>, vector<8x256xf32>, vector<8x256xf32>, vector<8x256xf32>, vector<8x256xf32>, vector<8x256xf32>, vector<8x256xf32> -> vector<128x256xf32>
    %102 = tpu.concatenate %68, %72, %76, %80, %84, %88, %92, %96, %100 in 0 : vector<8x256xf32>, vector<8x256xf32>, vector<8x256xf32>, vector<8x256xf32>, vector<8x256xf32>, vector<8x256xf32>, vector<8x256xf32>, vector<8x256xf32>, vector<8x256xf32> -> vector<72x256xf32>
    %103 = tpu.concatenate %101, %102 in 0 : vector<128x256xf32>, vector<72x256xf32> -> vector<200x256xf32>
    %c0_28 = arith.constant 0 : index
    %c0_29 = arith.constant 0 : index
    %104 = vector.load %arg2[%c0_28, %c0_29] : memref<32x200xf32, #tpu.memory_space<vmem>>, vector<32x200xf32>
    %cst = arith.constant dense<0.000000e+00> : vector<32x256xf32>
    %105 = tpu.matmul %104, %103, %cst {dimension_numbers = #tpu.dot_dimension_numbers<[1], [0], [0], [1], [0, 0, 1, 1], [], []>} : vector<32x200xf32>, vector<200x256xf32>, vector<32x256xf32> -> vector<32x256xf32>
    %c0_30 = arith.constant 0 : index
    %c0_31 = arith.constant 0 : index
    %106 = vector.load %arg3[%c0_30, %c0_31] : memref<32x1xf32, #tpu.memory_space<vmem>>, vector<32x1xf32>
    %107 = vector.broadcast %106 : vector<32x1xf32> to vector<32x256xf32>
    %108 = arith.addf %105, %107 : vector<32x256xf32>
    %cst_32 = arith.constant 0.000000e+00 : f32
    %109 = vector.broadcast %cst_32 : f32 to vector<32x256xf32>
    %110 = arith.cmpf oge, %108, %109 : vector<32x256xf32>
    %cst_33 = arith.constant 1.000000e-01 : f32
    %111 = vector.broadcast %cst_33 : f32 to vector<32x256xf32>
    %112 = arith.mulf %111, %108 : vector<32x256xf32>
    %113 = arith.select %110, %108, %112 : vector<32x256xi1>, vector<32x256xf32>
    %c17_i32_34 = arith.constant 17 : i32
    %114 = tpu.dynamic_rotate %113 by %c17_i32_34 dim 1 : vector<32x256xf32>, i32 -> vector<32x256xf32>
    %c0_35 = arith.constant 0 : index
    %c0_36 = arith.constant 0 : index
    %115 = vector.load %arg7[%c0_35, %c0_36] : memref<9x256xf32, #tpu.memory_space<vmem>>, vector<1x256xf32>
    %116 = vector.broadcast %115 : vector<1x256xf32> to vector<32x256xf32>
    %117 = arith.mulf %114, %116 : vector<32x256xf32>
    %c16_i32_37 = arith.constant 16 : i32
    %118 = tpu.dynamic_rotate %113 by %c16_i32_37 dim 1 : vector<32x256xf32>, i32 -> vector<32x256xf32>
    %c1_38 = arith.constant 1 : index
    %c0_39 = arith.constant 0 : index
    %119 = vector.load %arg7[%c1_38, %c0_39] : memref<9x256xf32, #tpu.memory_space<vmem>>, vector<1x256xf32>
    %120 = vector.broadcast %119 : vector<1x256xf32> to vector<32x256xf32>
    %121 = arith.mulf %118, %120 : vector<32x256xf32>
    %c15_i32_40 = arith.constant 15 : i32
    %122 = tpu.dynamic_rotate %113 by %c15_i32_40 dim 1 : vector<32x256xf32>, i32 -> vector<32x256xf32>
    %c2_41 = arith.constant 2 : index
    %c0_42 = arith.constant 0 : index
    %123 = vector.load %arg7[%c2_41, %c0_42] : memref<9x256xf32, #tpu.memory_space<vmem>>, vector<1x256xf32>
    %124 = vector.broadcast %123 : vector<1x256xf32> to vector<32x256xf32>
    %125 = arith.mulf %122, %124 : vector<32x256xf32>
    %c1_i32_43 = arith.constant 1 : i32
    %126 = tpu.dynamic_rotate %113 by %c1_i32_43 dim 1 : vector<32x256xf32>, i32 -> vector<32x256xf32>
    %c3_44 = arith.constant 3 : index
    %c0_45 = arith.constant 0 : index
    %127 = vector.load %arg7[%c3_44, %c0_45] : memref<9x256xf32, #tpu.memory_space<vmem>>, vector<1x256xf32>
    %128 = vector.broadcast %127 : vector<1x256xf32> to vector<32x256xf32>
    %129 = arith.mulf %126, %128 : vector<32x256xf32>
    %c4_46 = arith.constant 4 : index
    %c0_47 = arith.constant 0 : index
    %130 = vector.load %arg7[%c4_46, %c0_47] : memref<9x256xf32, #tpu.memory_space<vmem>>, vector<1x256xf32>
    %131 = vector.broadcast %130 : vector<1x256xf32> to vector<32x256xf32>
    %132 = arith.mulf %113, %131 : vector<32x256xf32>
    %c255_i32_48 = arith.constant 255 : i32
    %133 = tpu.dynamic_rotate %113 by %c255_i32_48 dim 1 : vector<32x256xf32>, i32 -> vector<32x256xf32>
    %c5_49 = arith.constant 5 : index
    %c0_50 = arith.constant 0 : index
    %134 = vector.load %arg7[%c5_49, %c0_50] : memref<9x256xf32, #tpu.memory_space<vmem>>, vector<1x256xf32>
    %135 = vector.broadcast %134 : vector<1x256xf32> to vector<32x256xf32>
    %136 = arith.mulf %133, %135 : vector<32x256xf32>
    %c241_i32_51 = arith.constant 241 : i32
    %137 = tpu.dynamic_rotate %113 by %c241_i32_51 dim 1 : vector<32x256xf32>, i32 -> vector<32x256xf32>
    %c6_52 = arith.constant 6 : index
    %c0_53 = arith.constant 0 : index
    %138 = vector.load %arg7[%c6_52, %c0_53] : memref<9x256xf32, #tpu.memory_space<vmem>>, vector<1x256xf32>
    %139 = vector.broadcast %138 : vector<1x256xf32> to vector<32x256xf32>
    %140 = arith.mulf %137, %139 : vector<32x256xf32>
    %c240_i32_54 = arith.constant 240 : i32
    %141 = tpu.dynamic_rotate %113 by %c240_i32_54 dim 1 : vector<32x256xf32>, i32 -> vector<32x256xf32>
    %c7_55 = arith.constant 7 : index
    %c0_56 = arith.constant 0 : index
    %142 = vector.load %arg7[%c7_55, %c0_56] : memref<9x256xf32, #tpu.memory_space<vmem>>, vector<1x256xf32>
    %143 = vector.broadcast %142 : vector<1x256xf32> to vector<32x256xf32>
    %144 = arith.mulf %141, %143 : vector<32x256xf32>
    %c239_i32_57 = arith.constant 239 : i32
    %145 = tpu.dynamic_rotate %113 by %c239_i32_57 dim 1 : vector<32x256xf32>, i32 -> vector<32x256xf32>
    %c8_58 = arith.constant 8 : index
    %c0_59 = arith.constant 0 : index
    %146 = vector.load %arg7[%c8_58, %c0_59] : memref<9x256xf32, #tpu.memory_space<vmem>>, vector<1x256xf32>
    %147 = vector.broadcast %146 : vector<1x256xf32> to vector<32x256xf32>
    %148 = arith.mulf %145, %147 : vector<32x256xf32>
    %149 = tpu.concatenate %117, %121, %125, %129, %132, %136, %140, %144, %148 in 0 : vector<32x256xf32>, vector<32x256xf32>, vector<32x256xf32>, vector<32x256xf32>, vector<32x256xf32>, vector<32x256xf32>, vector<32x256xf32>, vector<32x256xf32>, vector<32x256xf32> -> vector<288x256xf32>
    %c0_60 = arith.constant 0 : index
    %c0_61 = arith.constant 0 : index
    %150 = vector.load %arg4[%c0_60, %c0_61] : memref<32x288xf32, #tpu.memory_space<vmem>>, vector<32x288xf32>
    %cst_62 = arith.constant dense<0.000000e+00> : vector<32x256xf32>
    %151 = tpu.matmul %150, %149, %cst_62 {dimension_numbers = #tpu.dot_dimension_numbers<[1], [0], [0], [1], [0, 0, 1, 1], [], []>} : vector<32x288xf32>, vector<288x256xf32>, vector<32x256xf32> -> vector<32x256xf32>
    %c0_63 = arith.constant 0 : index
    %c0_64 = arith.constant 0 : index
    %152 = vector.load %arg5[%c0_63, %c0_64] : memref<32x1xf32, #tpu.memory_space<vmem>>, vector<32x1xf32>
    %153 = vector.broadcast %152 : vector<32x1xf32> to vector<32x256xf32>
    %154 = arith.addf %151, %153 : vector<32x256xf32>
    %cst_65 = arith.constant 0.000000e+00 : f32
    %155 = vector.broadcast %cst_65 : f32 to vector<32x256xf32>
    %156 = arith.cmpf oge, %154, %155 : vector<32x256xf32>
    %cst_66 = arith.constant 1.000000e-01 : f32
    %157 = vector.broadcast %cst_66 : f32 to vector<32x256xf32>
    %158 = arith.mulf %157, %154 : vector<32x256xf32>
    %159 = arith.select %156, %154, %158 : vector<32x256xi1>, vector<32x256xf32>
    %c0_67 = arith.constant 0 : index
    %c0_68 = arith.constant 0 : index
    %c0_69 = arith.constant 0 : index
    %160 = vector.load %arg8[%c0_67, %c0_68, %c0_69] : memref<1x32x256xf32, #tpu.memory_space<vmem>>, vector<1x32x256xf32>
    %161 = vector.shape_cast %160 : vector<1x32x256xf32> to vector<32x256xf32>
    %162 = vector.shape_cast %159 : vector<32x256xf32> to vector<1x32x256xf32>
    tpu.vector_store %arg8[%c0_67, %c0_68, %c0_69], %162 {strides = array<i32>} : memref<1x32x256xf32, #tpu.memory_space<vmem>>, vector<1x32x256xf32>,
    return
  }
  func.func @transform_0(%arg0: i32) -> (i32, i32, i32) {
    %c0_i32 = arith.constant 0 : i32
    %c0_i32_0 = arith.constant 0 : i32
    %c0_i32_1 = arith.constant 0 : i32
    return %arg0, %c0_i32, %c0_i32_0 : i32, i32, i32
  }
  func.func @transform_1(%arg0: i32) -> (i32, i32) {
    %c0_i32 = arith.constant 0 : i32
    %c0_i32_0 = arith.constant 0 : i32
    %c0_i32_1 = arith.constant 0 : i32
    return %c0_i32, %c0_i32_0 : i32, i32
  }
  func.func @transform_2(%arg0: i32) -> (i32, i32) {
    %c0_i32 = arith.constant 0 : i32
    %c0_i32_0 = arith.constant 0 : i32
    %c0_i32_1 = arith.constant 0 : i32
    return %c0_i32, %c0_i32_0 : i32, i32
  }
  func.func @transform_3(%arg0: i32) -> (i32, i32) {
    %c0_i32 = arith.constant 0 : i32
    %c0_i32_0 = arith.constant 0 : i32
    %c0_i32_1 = arith.constant 0 : i32
    return %c0_i32, %c0_i32_0 : i32, i32
  }
  func.func @transform_4(%arg0: i32) -> (i32, i32) {
    %c0_i32 = arith.constant 0 : i32
    %c0_i32_0 = arith.constant 0 : i32
    %c0_i32_1 = arith.constant 0 : i32
    return %c0_i32, %c0_i32_0 : i32, i32
  }
  func.func @transform_5(%arg0: i32) -> (i32, i32) {
    %c0_i32 = arith.constant 0 : i32
    %c0_i32_0 = arith.constant 0 : i32
    %c0_i32_1 = arith.constant 0 : i32
    return %c0_i32, %c0_i32_0 : i32, i32
  }
  func.func @transform_6(%arg0: i32) -> (i32, i32) {
    %c0_i32 = arith.constant 0 : i32
    %c0_i32_0 = arith.constant 0 : i32
    %c0_i32_1 = arith.constant 0 : i32
    return %c0_i32, %c0_i32_0 : i32, i32
  }
  func.func @transform_7(%arg0: i32) -> (i32, i32, i32) {
    %c0_i32 = arith.constant 0 : i32
    %c0_i32_0 = arith.constant 0 : i32
    %c0_i32_1 = arith.constant 0 : i32
    return %arg0, %c0_i32, %c0_i32_0 : i32, i32, i32
  }
}

</mosaic_0001>

<llo_original>
// kernel: sfe_forward.1
$region0: #{sfe_forward.1}
  #allocation0 [shape = 'u32[]', space=smem, size = 0x4, offset = 0x4, fixed_abs, tag = 'smem constant byte address 0x4 - core index']
  #allocation1 [shape = 'u32[72,128]{1,0:T(1,128)}', space=vmem, size = 0x9000, scoped, tag = 'internal scratch']
  %s0 = inlined_call_operand.vmem [shape: f32[2,8,256], index: 0, kind: input, shape index: {}]
  %s1 = inlined_call_operand.vmem [shape: f32[32,200], index: 1, kind: input, shape index: {}]
  %s2 = inlined_call_operand.vmem [shape: f32[32,1], index: 2, kind: input, shape index: {}]
  %s3 = inlined_call_operand.vmem [shape: f32[32,288], index: 3, kind: input, shape index: {}]
  %s4 = inlined_call_operand.vmem [shape: f32[32,1], index: 4, kind: input, shape index: {}]
  %s5 = inlined_call_operand.vmem [shape: f32[25,256], index: 5, kind: input, shape index: {}]
  %s6 = inlined_call_operand.vmem [shape: f32[9,256], index: 6, kind: input, shape index: {}]
  %s7 = inlined_call_operand.vmem [shape: f32[2,32,256], index: 7, kind: output, shape index: {}]
  %s8 = sld [smem:[#allocation0]]
  $region61: #{sfe_forward.1} parent=0
    _
  %s10 = ssub.s32 1, %s8
  %s11 = scalar_select 0, %s10, %s8
  loop: start=0, step=1, limit=4
  $region2: #{sfe_forward.1} parent=0 // loop_pre_header
    _
  $region3: #{sfe_forward.1} parent=0 // loop_header
    %s13 = sphi 0, %s17
    %p14 = scmp.ge.s32.totalorder %s13, 4
    %s23 = sphi 0, %s25
    %s26 = sphi 0, %s23
    %s27 = sphi 0, %s26
    %s43 = sphi 0, %s27
    %s47 = sphi 0, %s47
    %s49 = sphi 0, %s47
    %s50 = sphi 0, %s49
    %s64 = sphi 0, %s50
    %s68 = sphi 0, %s68
    %s70 = sphi 0, %s68
    %s71 = sphi 0, %s70
    %s85 = sphi 0, %s71
    %s89 = sphi 0, %s89
    %s91 = sphi 0, %s89
    %s92 = sphi 0, %s91
    %s106 = sphi 0, %s92
    %s110 = sphi 0, %s110
    %s112 = sphi 0, %s110
    %s113 = sphi 0, %s112
    %s127 = sphi 0, %s113
    %s131 = sphi 0, %s131
    %s133 = sphi 0, %s131
    %s134 = sphi 0, %s133
    %s148 = sphi 0, %s134
    %s152 = sphi 0, %s152
    %s154 = sphi 0, %s152
    %s155 = sphi 0, %s154
    %s169 = sphi 0, %s155
    %s175 = sphi 0, %s177
    %s178 = sphi 0, %s175
    %s179 = sphi 0, %s178
    %s195 = sphi 0, %s179
  $region4: #{sfe_forward.1} parent=0 // loop_header_branch
    %16 = sbr.rel (%p14) target = $region8
  $region5: #{sfe_forward.1} parent=0 // loop_body
    %s18 = ssub.s32 %s13, 1
    %s19 = ssub.s32 %s13, 2
    %s20 = sadd.s32 %s13, 1
    %s21 = ssub.s32 %s13, %s20
    %p22 = scmp.eq.s32.totalorder %s21, 0
    %s24 = sadd.s32 %s23, 1
    %s25 = scalar_select %p22, %s23, %s24
    %p28 = pneg %p22
    %p29 = scmp.eq.s32.totalorder %s13, 1
    %p30 = por %p28, %p29
    %p31 = scmp.ne.s32.totalorder %s23, %s26
    %p32 = scmp.eq.s32.totalorder %s13, 0
    %p33 = por %p31, %p32
    %p34 = scmp.ne.s32.totalorder %s23, %s26
    %p35 = scmp.eq.s32.totalorder %s18, 1
    %p36 = por %p34, %p35
    %p37 = scmp.ne.s32.totalorder %s26, %s27
    %p38 = scmp.eq.s32.totalorder %s18, 0
    %p39 = por %p37, %p38
    %p40 = scmp.ne.s32.totalorder %s26, %s27
    %p41 = scmp.eq.s32.totalorder %s19, 1
    %p42 = por %p40, %p41
    %p44 = scmp.ne.s32.totalorder %s27, %s43
    %p45 = scmp.eq.s32.totalorder %s19, 0
    %p46 = por %p44, %p45
    %s48 = sadd.s32 %s47, 1
    %p51 = scmp.eq.s32.totalorder %s13, 1
    %p52 = scmp.ne.s32.totalorder %s47, %s49
    %p53 = scmp.eq.s32.totalorder %s13, 0
    %p54 = por %p52, %p53
    %p55 = scmp.ne.s32.totalorder %s47, %s49
    %p56 = scmp.eq.s32.totalorder %s18, 1
    %p57 = por %p55, %p56
    %p58 = scmp.ne.s32.totalorder %s49, %s50
    %p59 = scmp.eq.s32.totalorder %s18, 0
    %p60 = por %p58, %p59
    %p61 = scmp.ne.s32.totalorder %s49, %s50
    %p62 = scmp.eq.s32.totalorder %s19, 1
    %p63 = por %p61, %p62
    %p65 = scmp.ne.s32.totalorder %s50, %s64
    %p66 = scmp.eq.s32.totalorder %s19, 0
    %p67 = por %p65, %p66
    %s69 = sadd.s32 %s68, 1
    %p72 = scmp.eq.s32.totalorder %s13, 1
    %p73 = scmp.ne.s32.totalorder %s68, %s70
    %p74 = scmp.eq.s32.totalorder %s13, 0
    %p75 = por %p73, %p74
    %p76 = scmp.ne.s32.totalorder %s68, %s70
    %p77 = scmp.eq.s32.totalorder %s18, 1
    %p78 = por %p76, %p77
    %p79 = scmp.ne.s32.totalorder %s70, %s71
    %p80 = scmp.eq.s32.totalorder %s18, 0
    %p81 = por %p79, %p80
    %p82 = scmp.ne.s32.totalorder %s70, %s71
    %p83 = scmp.eq.s32.totalorder %s19, 1
    %p84 = por %p82, %p83
    %p86 = scmp.ne.s32.totalorder %s71, %s85
    %p87 = scmp.eq.s32.totalorder %s19, 0
    %p88 = por %p86, %p87
    %s90 = sadd.s32 %s89, 1
    %p93 = scmp.eq.s32.totalorder %s13, 1
    %p94 = scmp.ne.s32.totalorder %s89, %s91
    %p95 = scmp.eq.s32.totalorder %s13, 0
    %p96 = por %p94, %p95
    %p97 = scmp.ne.s32.totalorder %s89, %s91
    %p98 = scmp.eq.s32.totalorder %s18, 1
    %p99 = por %p97, %p98
    %p100 = scmp.ne.s32.totalorder %s91, %s92
    %p101 = scmp.eq.s32.totalorder %s18, 0
    %p102 = por %p100, %p101
    %p103 = scmp.ne.s32.totalorder %s91, %s92
    %p104 = scmp.eq.s32.totalorder %s19, 1
    %p105 = por %p103, %p104
    %p107 = scmp.ne.s32.totalorder %s92, %s106
    %p108 = scmp.eq.s32.totalorder %s19, 0
    %p109 = por %p107, %p108
    %s111 = sadd.s32 %s110, 1
    %p114 = scmp.eq.s32.totalorder %s13, 1
    %p115 = scmp.ne.s32.totalorder %s110, %s112
    %p116 = scmp.eq.s32.totalorder %s13, 0
    %p117 = por %p115, %p116
    %p118 = scmp.ne.s32.totalorder %s110, %s112
    %p119 = scmp.eq.s32.totalorder %s18, 1
    %p120 = por %p118, %p119
    %p121 = scmp.ne.s32.totalorder %s112, %s113
    %p122 = scmp.eq.s32.totalorder %s18, 0
    %p123 = por %p121, %p122
    %p124 = scmp.ne.s32.totalorder %s112, %s113
    %p125 = scmp.eq.s32.totalorder %s19, 1
    %p126 = por %p124, %p125
    %p128 = scmp.ne.s32.totalorder %s113, %s127
    %p129 = scmp.eq.s32.totalorder %s19, 0
    %p130 = por %p128, %p129
    %s132 = sadd.s32 %s131, 1
    %p135 = scmp.eq.s32.totalorder %s13, 1
    %p136 = scmp.ne.s32.totalorder %s131, %s133
    %p137 = scmp.eq.s32.totalorder %s13, 0
    %p138 = por %p136, %p137
    %p139 = scmp.ne.s32.totalorder %s131, %s133
    %p140 = scmp.eq.s32.totalorder %s18, 1
    %p141 = por %p139, %p140
    %p142 = scmp.ne.s32.totalorder %s133, %s134
    %p143 = scmp.eq.s32.totalorder %s18, 0
    %p144 = por %p142, %p143
    %p145 = scmp.ne.s32.totalorder %s133, %s134
    %p146 = scmp.eq.s32.totalorder %s19, 1
    %p147 = por %p145, %p146
    %p149 = scmp.ne.s32.totalorder %s134, %s148
    %p150 = scmp.eq.s32.totalorder %s19, 0
    %p151 = por %p149, %p150
    %s153 = sadd.s32 %s152, 1
    %p156 = scmp.eq.s32.totalorder %s13, 1
    %p157 = scmp.ne.s32.totalorder %s152, %s154
    %p158 = scmp.eq.s32.totalorder %s13, 0
    %p159 = por %p157, %p158
    %p160 = scmp.ne.s32.totalorder %s152, %s154
    %p161 = scmp.eq.s32.totalorder %s18, 1
    %p162 = por %p160, %p161
    %p163 = scmp.ne.s32.totalorder %s154, %s155
    %p164 = scmp.eq.s32.totalorder %s18, 0
    %p165 = por %p163, %p164
    %p166 = scmp.ne.s32.totalorder %s154, %s155
    %p167 = scmp.eq.s32.totalorder %s19, 1
    %p168 = por %p166, %p167
    %p170 = scmp.ne.s32.totalorder %s155, %s169
    %p171 = scmp.eq.s32.totalorder %s19, 0
    %p172 = por %p170, %p171
    %s173 = ssub.s32 %s13, %s20
    %p174 = scmp.eq.s32.totalorder %s173, 0
    %s176 = sadd.s32 %s175, 1
    %s177 = scalar_select %p174, %s175, %s176
    %p180 = pneg %p174
    %p181 = scmp.eq.s32.totalorder %s13, 1
    %p182 = por %p180, %p181
    %p183 = scmp.ne.s32.totalorder %s175, %s178
    %p184 = scmp.eq.s32.totalorder %s13, 0
    %p185 = por %p183, %p184
    %p186 = scmp.ne.s32.totalorder %s175, %s178
    %p187 = scmp.eq.s32.totalorder %s18, 1
    %p188 = por %p186, %p187
    %p189 = scmp.ne.s32.totalorder %s178, %s179
    %p190 = scmp.eq.s32.totalorder %s18, 0
    %p191 = por %p189, %p190
    %p192 = scmp.ne.s32.totalorder %s178, %s179
    %p193 = scmp.eq.s32.totalorder %s19, 1
    %p194 = por %p192, %p193
    %p196 = scmp.ne.s32.totalorder %s179, %s195
    %p197 = scmp.eq.s32.totalorder %s19, 0
    %p198 = por %p196, %p197
    %p199 = scmp.le.s32.totalorder 1, %s13
    %p200 = scmp.lt.s32.totalorder %s13, 3
    %p201 = pnand %p199, %p200
    %p202 = pneg %p201
    // Predicated region
    $region9: #{sfe_forward.1} parent=5 // pred_check
      _
    $region10: #{sfe_forward.1} parent=5 // pred_check_branch
      %204 = sbr.rel (%p201) target = $region12
    $region11: #{sfe_forward.1} parent=5 // pred_region
      %s205 = ssub.s32 %s13, 1
      // Predicated region
      $region13: #{sfe_forward.1} parent=11 // pred_check
        %p206 = pneg %p60
      $region14: #{sfe_forward.1} parent=11 // pred_check_branch
        %208 = sbr.rel (%p206) target = $region16
      $region15: #{sfe_forward.1} parent=11 // pred_region
        _
      $region16: #{sfe_forward.1} parent=11 // pred_fallthru
        _
      // Predicated region
      $region17: #{sfe_forward.1} parent=11 // pred_check
        %p209 = pneg %p81
      $region18: #{sfe_forward.1} parent=11 // pred_check_branch
        %211 = sbr.rel (%p209) target = $region20
      $region19: #{sfe_forward.1} parent=11 // pred_region
        _
      $region20: #{sfe_forward.1} parent=11 // pred_fallthru
        _
      // Predicated region
      $region21: #{sfe_forward.1} parent=11 // pred_check
        %p212 = pneg %p102
      $region22: #{sfe_forward.1} parent=11 // pred_check_branch
        %214 = sbr.rel (%p212) target = $region24
      $region23: #{sfe_forward.1} parent=11 // pred_region
        _
      $region24: #{sfe_forward.1} parent=11 // pred_fallthru
        _
      // Predicated region
      $region25: #{sfe_forward.1} parent=11 // pred_check
        %p215 = pneg %p123
      $region26: #{sfe_forward.1} parent=11 // pred_check_branch
        %217 = sbr.rel (%p215) target = $region28
      $region27: #{sfe_forward.1} parent=11 // pred_region
        _
      $region28: #{sfe_forward.1} parent=11 // pred_fallthru
        _
      // Predicated region
      $region29: #{sfe_forward.1} parent=11 // pred_check
        %p218 = pneg %p144
      $region30: #{sfe_forward.1} parent=11 // pred_check_branch
        %220 = sbr.rel (%p218) target = $region32
      $region31: #{sfe_forward.1} parent=11 // pred_region
        _
      $region32: #{sfe_forward.1} parent=11 // pred_fallthru
        _
      // Predicated region
      $region33: #{sfe_forward.1} parent=11 // pred_check
        %p221 = pneg %p165
      $region34: #{sfe_forward.1} parent=11 // pred_check_branch
        %223 = sbr.rel (%p221) target = $region36
      $region35: #{sfe_forward.1} parent=11 // pred_region
        _
      $region36: #{sfe_forward.1} parent=11 // pred_fallthru
        _
    $region12: #{sfe_forward.1} parent=5 // pred_fallthru
      _
    %p224 = scmp.lt.s32.totalorder %s13, 2
    // Predicated region
    $region37: #{sfe_forward.1} parent=5 // pred_check
      %p225 = pneg %p224
    $region38: #{sfe_forward.1} parent=5 // pred_check_branch
      %227 = sbr.rel (%p225) target = $region40
    $region39: #{sfe_forward.1} parent=5 // pred_region
      // Predicated region
      $region41: #{sfe_forward.1} parent=39 // pred_check
        %p228 = pneg %p33
      $region42: #{sfe_forward.1} parent=39 // pred_check_branch
        %230 = sbr.rel (%p228) target = $region44
      $region43: #{sfe_forward.1} parent=39 // pred_region
        %p231 = scmp.lt.s32.totalorder %s13, 1
        %s232 = scalar_select %p231, %s13, 1
        %s233 = smul.addr %s232, 2
        %s234 = smul.addr %s233, 8
        %s235 = scalar_lea.vmem %s0, %s234
      $region44: #{sfe_forward.1} parent=39 // pred_fallthru
        _
    $region40: #{sfe_forward.1} parent=5 // pred_fallthru
      _
    %p236 = scmp.le.s32.totalorder 1, %s13
    %p237 = scmp.lt.s32.totalorder %s13, 3
    %p238 = pnand %p236, %p237
    %p239 = pneg %p238
    // Predicated region
    $region45: #{sfe_forward.1} parent=5 // pred_check
      _
    $region46: #{sfe_forward.1} parent=5 // pred_check_branch
      %241 = sbr.rel (%p238) target = $region48
    $region47: #{sfe_forward.1} parent=5 // pred_region
      %s242 = ssub.s32 %s13, 1
      %p243 = scmp.lt.s32.totalorder %s18, 1
      %s244 = scalar_select %p243, %s18, 1
      %s245 = smul.addr %s244, 2
      %s246 = smul.addr %s245, 8
      %s247 = scalar_lea.vmem %s0, %s246
      %p248 = pneg %p39
      %p249 = pneg %p36
      %p250 = pneg %p60
      %p251 = pneg %p57
      %p252 = pneg %p81
      %p253 = pneg %p78
      %p254 = pneg %p102
      %p255 = pneg %p99
      %p256 = pneg %p123
      %p257 = pneg %p120
      %p258 = pneg %p144
      %p259 = pneg %p141
      %p260 = pneg %p165
      %p261 = pneg %p162
      %p262 = pneg %p191
      %p263 = pneg %p188
      %p264 = scmp.lt.s32.totalorder %s18, 1
      %s265 = scalar_select %p264, %s18, 1
      %s266 = smul.addr %s265, 8
      %s267 = smul.addr %s266, 8
      %s268 = scalar_lea.vmem %s7, %s267
      %p269 = scmp.lt.s32.totalorder %s18, 1
      %s270 = scalar_select %p269, %s18, 1
      %s271 = smul.addr %s270, 2
      %s272 = smul.addr %s271, 8
      %s273 = scalar_lea.vmem %s0, %s272
      %p274 = scmp.lt.s32.totalorder %s18, 1
      %s275 = scalar_select %p274, %s18, 1
      %s276 = smul.addr %s275, 8
      %s277 = smul.addr %s276, 8
      %s278 = scalar_lea.vmem %s7, %s277
      %v279 = vld [vmem:[%s273] sm:$0xff]
      %v280 = vld [vmem:[%s273 + $0x8] sm:$0xff]
      %281 = vrot.lane.b32.xlu0 %v279, 34
      %v282 = vpop.permute.xlu0 %281
      %283 = vrot.lane.b32.xlu0 %v280, 34
      %v284 = vpop.permute.xlu0 %283
      %v285 = vlaneseq
      %v286 = vand.u32 %v285, 127
      %vm287 = vcmp.lt.s32.totalorder %v286, 34
      %v288 = vsel %vm287, %v282, %v284
      %v289 = vsel %vm287, %v284, %v282
      %v290 = vld [vmem:[%s5] ss:$8 sm:$0x3]
      %v292 = vperm.slane %v290, 0
      %v293 = vperm.slane %v290, 1
      %v296 = vmul.f32 %v289, %v292
      %v297 = vmul.f32 %v288, %v293
      %298 = vrot.lane.b32.xlu0 %v279, 33
      %v299 = vpop.permute.xlu0 %298
      %300 = vrot.lane.b32.xlu0 %v280, 33
      %v301 = vpop.permute.xlu0 %300
      %vm302 = vcmp.lt.s32.totalorder %v286, 33
      %v303 = vsel %vm302, %v299, %v301
      %v304 = vsel %vm302, %v301, %v299
      %s305 = scalar_lea.vmem %s5, 1
      %v306 = vld [vmem:[%s305] ss:$8 sm:$0x3]
      %v308 = vperm.slane %v306, 0
      %v309 = vperm.slane %v306, 1
      %v312 = vmul.f32 %v304, %v308
      %v313 = vmul.f32 %v303, %v309
      %314 = vrot.lane.b32.xlu0 %v279, 32
      %v315 = vpop.permute.xlu0 %314
      %316 = vrot.lane.b32.xlu0 %v280, 32
      %v317 = vpop.permute.xlu0 %316
      %vm318 = vcmp.lt.s32.totalorder %v286, 32
      %v319 = vsel %vm318, %v315, %v317
      %v320 = vsel %vm318, %v317, %v315
      %s321 = scalar_lea.vmem %s5, 2
      %v322 = vld [vmem:[%s321] ss:$8 sm:$0x3]
      %v324 = vperm.slane %v322, 0
      %v325 = vperm.slane %v322, 1
      %v328 = vmul.f32 %v320, %v324
      %v329 = vmul.f32 %v319, %v325
      %330 = vrot.lane.b32.xlu0 %v279, 31
      %v331 = vpop.permute.xlu0 %330
      %332 = vrot.lane.b32.xlu0 %v280, 31
      %v333 = vpop.permute.xlu0 %332
      %vm334 = vcmp.lt.s32.totalorder %v286, 31
      %v335 = vsel %vm334, %v331, %v333
      %v336 = vsel %vm334, %v333, %v331
      %s337 = scalar_lea.vmem %s5, 3
      %v338 = vld [vmem:[%s337] ss:$8 sm:$0x3]
      %v340 = vperm.slane %v338, 0
      %v341 = vperm.slane %v338, 1
      %v344 = vmul.f32 %v336, %v340
      %v345 = vmul.f32 %v335, %v341
      %346 = vrot.lane.b32.xlu0 %v279, 30
      %v347 = vpop.permute.xlu0 %346
      %348 = vrot.lane.b32.xlu0 %v280, 30
      %v349 = vpop.permute.xlu0 %348
      %vm350 = vcmp.lt.s32.totalorder %v286, 30
      %v351 = vsel %vm350, %v347, %v349
      %v352 = vsel %vm350, %v349, %v347
      %s353 = scalar_lea.vmem %s5, 4
      %v354 = vld [vmem:[%s353] ss:$8 sm:$0x3]
      %v356 = vperm.slane %v354, 0
      %v357 = vperm.slane %v354, 1
      %v360 = vmul.f32 %v352, %v356
      %v361 = vmul.f32 %v351, %v357
      %362 = vrot.lane.b32.xlu0 %v279, 18
      %v363 = vpop.permute.xlu0 %362
      %364 = vrot.lane.b32.xlu0 %v280, 18
      %v365 = vpop.permute.xlu0 %364
      %vm366 = vcmp.lt.s32.totalorder %v286, 18
      %v367 = vsel %vm366, %v363, %v365
      %v368 = vsel %vm366, %v365, %v363
      %s369 = scalar_lea.vmem %s5, 5
      %v370 = vld [vmem:[%s369] ss:$8 sm:$0x3]
      %v372 = vperm.slane %v370, 0
      %v373 = vperm.slane %v370, 1
      %v376 = vmul.f32 %v368, %v372
      %v377 = vmul.f32 %v367, %v373
      %378 = vrot.lane.b32.xlu0 %v279, 17
      %v379 = vpop.permute.xlu0 %378
      %380 = vrot.lane.b32.xlu0 %v280, 17
      %v381 = vpop.permute.xlu0 %380
      %vm382 = vcmp.lt.s32.totalorder %v286, 17
      %v383 = vsel %vm382, %v379, %v381
      %v384 = vsel %vm382, %v381, %v379
      %s385 = scalar_lea.vmem %s5, 6
      %v386 = vld [vmem:[%s385] ss:$8 sm:$0x3]
      %v388 = vperm.slane %v386, 0
      %v389 = vperm.slane %v386, 1
      %v392 = vmul.f32 %v384, %v388
      %v393 = vmul.f32 %v383, %v389
      %394 = vrot.lane.b32.xlu0 %v279, 16
      %v395 = vpop.permute.xlu0 %394
      %396 = vrot.lane.b32.xlu0 %v280, 16
      %v397 = vpop.permute.xlu0 %396
      %vm398 = vcmp.lt.s32.totalorder %v286, 16
      %v399 = vsel %vm398, %v395, %v397
      %v400 = vsel %vm398, %v397, %v395
      %s401 = scalar_lea.vmem %s5, 7
      %v402 = vld [vmem:[%s401] ss:$8 sm:$0x3]
      %v404 = vperm.slane %v402, 0
      %v405 = vperm.slane %v402, 1
      %v408 = vmul.f32 %v400, %v404
      %v409 = vmul.f32 %v399, %v405
      %410 = vrot.lane.b32.xlu0 %v279, 15
      %v411 = vpop.permute.xlu0 %410
      %412 = vrot.lane.b32.xlu0 %v280, 15
      %v413 = vpop.permute.xlu0 %412
      %vm414 = vcmp.lt.s32.totalorder %v286, 15
      %v415 = vsel %vm414, %v411, %v413
      %v416 = vsel %vm414, %v413, %v411
      %s417 = scalar_lea.vmem %s5, 16
      %v418 = vld [vmem:[%s417] ss:$8 sm:$0x3]
      %v420 = vperm.slane %v418, 0
      %v421 = vperm.slane %v418, 1
      %v424 = vmul.f32 %v416, %v420
      %v425 = vmul.f32 %v415, %v421
      %426 = vrot.lane.b32.xlu0 %v279, 14
      %v427 = vpop.permute.xlu0 %426
      %428 = vrot.lane.b32.xlu0 %v280, 14
      %v429 = vpop.permute.xlu0 %428
      %vm430 = vcmp.lt.s32.totalorder %v286, 14
      %v431 = vsel %vm430, %v427, %v429
      %v432 = vsel %vm430, %v429, %v427
      %s433 = scalar_lea.vmem %s5, 17
      %v434 = vld [vmem:[%s433] ss:$8 sm:$0x3]
      %v436 = vperm.slane %v434, 0
      %v437 = vperm.slane %v434, 1
      %v440 = vmul.f32 %v432, %v436
      %v441 = vmul.f32 %v431, %v437
      %442 = vrot.lane.b32.xlu0 %v279, 2
      %v443 = vpop.permute.xlu0 %442
      %444 = vrot.lane.b32.xlu0 %v280, 2
      %v445 = vpop.permute.xlu0 %444
      %vm446 = vcmp.lt.s32.totalorder %v286, 2
      %v447 = vsel %vm446, %v443, %v445
      %v448 = vsel %vm446, %v445, %v443
      %s449 = scalar_lea.vmem %s5, 18
      %v450 = vld [vmem:[%s449] ss:$8 sm:$0x3]
      %v452 = vperm.slane %v450, 0
      %v453 = vperm.slane %v450, 1
      %v456 = vmul.f32 %v448, %v452
      %v457 = vmul.f32 %v447, %v453
      %458 = vrot.lane.b32.xlu0 %v279, 1
      %v459 = vpop.permute.xlu0 %458
      %460 = vrot.lane.b32.xlu0 %v280, 1
      %v461 = vpop.permute.xlu0 %460
      %vm462 = vcmp.lt.s32.totalorder %v286, 1
      %v463 = vsel %vm462, %v459, %v461
      %v464 = vsel %vm462, %v461, %v459
      %s465 = scalar_lea.vmem %s5, 19
      %v466 = vld [vmem:[%s465] ss:$8 sm:$0x3]
      %v468 = vperm.slane %v466, 0
      %v469 = vperm.slane %v466, 1
      %v472 = vmul.f32 %v464, %v468
      %v473 = vmul.f32 %v463, %v469
      %s474 = scalar_lea.vmem %s5, 20
      %v475 = vld [vmem:[%s474] ss:$8 sm:$0x3]
      %v477 = vperm.slane %v475, 0
      %v478 = vperm.slane %v475, 1
      %v481 = vmul.f32 %v279, %v477
      %v482 = vmul.f32 %v280, %v478
      %483 = vrot.lane.b32.xlu0 %v279, 127
      %v484 = vpop.permute.xlu0 %483
      %485 = vrot.lane.b32.xlu0 %v280, 127
      %v486 = vpop.permute.xlu0 %485
      %vm487 = vcmp.lt.s32.totalorder %v286, 127
      %v488 = vsel %vm487, %v484, %v486
      %v489 = vsel %vm487, %v486, %v484
      %s490 = scalar_lea.vmem %s5, 21
      %v491 = vld [vmem:[%s490] ss:$8 sm:$0x3]
      %v493 = vperm.slane %v491, 0
      %v494 = vperm.slane %v491, 1
      %v497 = vmul.f32 %v488, %v493
      %v498 = vmul.f32 %v489, %v494
      %499 = vrot.lane.b32.xlu0 %v279, 126
      %v500 = vpop.permute.xlu0 %499
      %501 = vrot.lane.b32.xlu0 %v280, 126
      %v502 = vpop.permute.xlu0 %501
      %vm503 = vcmp.lt.s32.totalorder %v286, 126
      %v504 = vsel %vm503, %v500, %v502
      %v505 = vsel %vm503, %v502, %v500
      %s506 = scalar_lea.vmem %s5, 22
      %v507 = vld [vmem:[%s506] ss:$8 sm:$0x3]
      %v509 = vperm.slane %v507, 0
      %v510 = vperm.slane %v507, 1
      %v513 = vmul.f32 %v504, %v509
      %v514 = vmul.f32 %v505, %v510
      %515 = vrot.lane.b32.xlu0 %v279, 114
      %v516 = vpop.permute.xlu0 %515
      %517 = vrot.lane.b32.xlu0 %v280, 114
      %v518 = vpop.permute.xlu0 %517
      %vm519 = vcmp.lt.s32.totalorder %v286, 114
      %v520 = vsel %vm519, %v516, %v518
      %v521 = vsel %vm519, %v518, %v516
      %s522 = scalar_lea.vmem %s5, 23
      %v523 = vld [vmem:[%s522] ss:$8 sm:$0x3]
      %v525 = vperm.slane %v523, 0
      %v526 = vperm.slane %v523, 1
      %v529 = vmul.f32 %v520, %v525
      %v530 = vmul.f32 %v521, %v526
      %531 = vrot.lane.b32.xlu0 %v279, 113
      %v532 = vpop.permute.xlu0 %531
      %533 = vrot.lane.b32.xlu0 %v280, 113
      %v534 = vpop.permute.xlu0 %533
      %vm535 = vcmp.lt.s32.totalorder %v286, 113
      %v536 = vsel %vm535, %v532, %v534
      %v537 = vsel %vm535, %v534, %v532
      %s538 = scalar_lea.vmem %s5, 32
      %v539 = vld [vmem:[%s538] ss:$8 sm:$0x3]
      %v541 = vperm.slane %v539, 0
      %v542 = vperm.slane %v539, 1
      %v545 = vmul.f32 %v536, %v541
      %v546 = vmul.f32 %v537, %v542
      %547 = vrot.lane.b32.xlu0 %v279, 112
      %v548 = vpop.permute.xlu0 %547
      %549 = vrot.lane.b32.xlu0 %v280, 112
      %v550 = vpop.permute.xlu0 %549
      %vm551 = vcmp.lt.s32.totalorder %v286, 112
      %v552 = vsel %vm551, %v548, %v550
      %v553 = vsel %vm551, %v550, %v548
      %s554 = scalar_lea.vmem %s5, 33
      %v555 = vld [vmem:[%s554] ss:$8 sm:$0x3]
      %v557 = vperm.slane %v555, 0
      %v558 = vperm.slane %v555, 1
      %v561 = vmul.f32 %v552, %v557
      %v562 = vmul.f32 %v553, %v558
      %563 = vrot.lane.b32.xlu0 %v279, 111
      %v564 = vpop.permute.xlu0 %563
      %565 = vrot.lane.b32.xlu0 %v280, 111
      %v566 = vpop.permute.xlu0 %565
      %vm567 = vcmp.lt.s32.totalorder %v286, 111
      %v568 = vsel %vm567, %v564, %v566
      %v569 = vsel %vm567, %v566, %v564
      %s570 = scalar_lea.vmem %s5, 34
      %v571 = vld [vmem:[%s570] ss:$8 sm:$0x3]
      %v573 = vperm.slane %v571, 0
      %v574 = vperm.slane %v571, 1
      %v577 = vmul.f32 %v568, %v573
      %v578 = vmul.f32 %v569, %v574
      %579 = vrot.lane.b32.xlu0 %v279, 110
      %v580 = vpop.permute.xlu0 %579
      %581 = vrot.lane.b32.xlu0 %v280, 110
      %v582 = vpop.permute.xlu0 %581
      %vm583 = vcmp.lt.s32.totalorder %v286, 110
      %v584 = vsel %vm583, %v580, %v582
      %v585 = vsel %vm583, %v582, %v580
      %s586 = scalar_lea.vmem %s5, 35
      %v587 = vld [vmem:[%s586] ss:$8 sm:$0x3]
      %v589 = vperm.slane %v587, 0
      %v590 = vperm.slane %v587, 1
      %v593 = vmul.f32 %v584, %v589
      %v594 = vmul.f32 %v585, %v590
      %595 = vrot.lane.b32.xlu0 %v279, 98
      %v596 = vpop.permute.xlu0 %595
      %597 = vrot.lane.b32.xlu0 %v280, 98
      %v598 = vpop.permute.xlu0 %597
      %vm599 = vcmp.lt.s32.totalorder %v286, 98
      %v600 = vsel %vm599, %v596, %v598
      %v601 = vsel %vm599, %v598, %v596
      %s602 = scalar_lea.vmem %s5, 36
      %v603 = vld [vmem:[%s602] ss:$8 sm:$0x3]
      %v605 = vperm.slane %v603, 0
      %v606 = vperm.slane %v603, 1
      %v609 = vmul.f32 %v600, %v605
      %v610 = vmul.f32 %v601, %v606
      %611 = vrot.lane.b32.xlu0 %v279, 97
      %v612 = vpop.permute.xlu0 %611
      %613 = vrot.lane.b32.xlu0 %v280, 97
      %v614 = vpop.permute.xlu0 %613
      %vm615 = vcmp.lt.s32.totalorder %v286, 97
      %v616 = vsel %vm615, %v612, %v614
      %v617 = vsel %vm615, %v614, %v612
      %s618 = scalar_lea.vmem %s5, 37
      %v619 = vld [vmem:[%s618] ss:$8 sm:$0x3]
      %v621 = vperm.slane %v619, 0
      %v622 = vperm.slane %v619, 1
      %v625 = vmul.f32 %v616, %v621
      %v626 = vmul.f32 %v617, %v622
      %627 = vrot.lane.b32.xlu0 %v279, 96
      %v628 = vpop.permute.xlu0 %627
      %629 = vrot.lane.b32.xlu0 %v280, 96
      %v630 = vpop.permute.xlu0 %629
      %vm631 = vcmp.lt.s32.totalorder %v286, 96
      %v632 = vsel %vm631, %v628, %v630
      %v633 = vsel %vm631, %v630, %v628
      %s634 = scalar_lea.vmem %s5, 38
      %v635 = vld [vmem:[%s634] ss:$8 sm:$0x3]
      %v637 = vperm.slane %v635, 0
      %v638 = vperm.slane %v635, 1
      %v641 = vmul.f32 %v632, %v637
      %v642 = vmul.f32 %v633, %v638
      %643 = vrot.lane.b32.xlu0 %v279, 95
      %v644 = vpop.permute.xlu0 %643
      %645 = vrot.lane.b32.xlu0 %v280, 95
      %v646 = vpop.permute.xlu0 %645
      %vm647 = vcmp.lt.s32.totalorder %v286, 95
      %v648 = vsel %vm647, %v644, %v646
      %v649 = vsel %vm647, %v646, %v644
      %s650 = scalar_lea.vmem %s5, 39
      %v651 = vld [vmem:[%s650] ss:$8 sm:$0x3]
      %v653 = vperm.slane %v651, 0
      %v654 = vperm.slane %v651, 1
      %v657 = vmul.f32 %v648, %v653
      %v658 = vmul.f32 %v649, %v654
      %659 = vrot.lane.b32.xlu0 %v279, 94
      %v660 = vpop.permute.xlu0 %659
      %661 = vrot.lane.b32.xlu0 %v280, 94
      %v662 = vpop.permute.xlu0 %661
      %vm663 = vcmp.lt.s32.totalorder %v286, 94
      %v664 = vsel %vm663, %v660, %v662
      %v665 = vsel %vm663, %v662, %v660
      %s666 = scalar_lea.vmem %s5, 48
      %v667 = vld [vmem:[%s666] ss:$8 sm:$0x3]
      %v669 = vperm.slane %v667, 0
      %v670 = vperm.slane %v667, 1
      %v673 = vmul.f32 %v664, %v669
      %v674 = vmul.f32 %v665, %v670
      %v675 = vld [vmem:[%s1] sm:$0xff]
      %v676 = vld [vmem:[%s1 + $0x8] sm:$0xff]
      %v677 = vld [vmem:[%s1 + $0x10] sm:$0xff]
      %v678 = vld [vmem:[%s1 + $0x18] sm:$0xff]
      %v679 = vld [vmem:[%s1 + $0x20] sm:$0xff]
      %v680 = vld [vmem:[%s1 + $0x28] sm:$0xff]
      %v681 = vld [vmem:[%s1 + $0x30] sm:$0xff]
      %v682 = vld [vmem:[%s1 + $0x38] sm:$0xff]
      %v683 = vld [vmem:[%s2] sm:$0xff]
      %v684 = vld [vmem:[%s2 + $0x8] sm:$0xff]
      %v685 = vld [vmem:[%s2 + $0x10] sm:$0xff]
      %v686 = vld [vmem:[%s2 + $0x18] sm:$0xff]
      %688 = vset.pattern.permute.xlu0 0
      %689 = vperm.xlu0 %688, %v683
      %v690 = vpop.permute.xlu0 %689
      %693 = vset.pattern.permute.xlu0 0
      %694 = vperm.xlu0 %693, %v684
      %v695 = vpop.permute.xlu0 %694
      %698 = vset.pattern.permute.xlu0 0
      %699 = vperm.xlu0 %698, %v685
      %v700 = vpop.permute.xlu0 %699
      %703 = vset.pattern.permute.xlu0 0
      %704 = vperm.xlu0 %703, %v686
      %v705 = vpop.permute.xlu0 %704
      %vm707 = vcmask 588800
      %v709 = vsel %vm707, %v676, 0
      %v712 = vsel %vm707, %v678, 0
      %v715 = vsel %vm707, %v680, 0
      %v718 = vsel %vm707, %v682, 0
      %720 = vmatpush.msra.mxu0 %v529
      %721 = vmatpush.msra.mxu0 %v513
      %722 = vmatpush.msra.mxu0 %v497
      %723 = vmatpush.msra.mxu0 %v481
      %724 = vmatpush.msra.mxu0 %v472
      %725 = vmatpush.msra.mxu0 %v456
      %726 = vmatpush.msra.mxu0 %v440
      %727 = vmatpush.msra.mxu0 %v424
      %728 = vmatpush.msra.mxu0 %v408
      %729 = vmatpush.msra.mxu0 %v392
      %730 = vmatpush.msra.mxu0 %v376
      %731 = vmatpush.msra.mxu0 %v360
      %732 = vmatpush.msra.mxu0 %v344
      %733 = vmatpush.msra.mxu0 %v328
      %734 = vmatpush.msra.mxu0 %v312
      %735 = vmatpush.msra.mxu0 %v296
      %736 = vmatmul.f32.gmra.mxu0 %v675
      %v737 = vpop.f32.mrf.mxu0
      %v738 = vadd.f32 %v690, %v737
      %739 = vmatmul.f32.gmra.mxu0 %v677
      %v740 = vpop.f32.mrf.mxu0
      %v741 = vadd.f32 %v695, %v740
      %742 = vmatmul.f32.gmra.mxu0 %v679
      %v743 = vpop.f32.mrf.mxu0
      %v744 = vadd.f32 %v700, %v743
      %745 = vmatmul.f32.gmra.mxu0 %v681
      %v746 = vpop.f32.mrf.mxu0
      %v747 = vadd.f32 %v705, %v746
      %748 = vdwg.mxu0
      %749 = vmatpush.msra.mxu0 0.0
      %750 = vmatpush.msra.mxu0 0.0
      %751 = vmatpush.msra.mxu0 0.0
      %752 = vmatpush.msra.mxu0 0.0
      %753 = vmatpush.msra.mxu0 0.0
      %754 = vmatpush.msra.mxu0 0.0
      %755 = vmatpush.msra.mxu0 0.0
      %756 = vmatpush.msra.mxu0 %v673
      %757 = vmatpush.msra.mxu0 %v657
      %758 = vmatpush.msra.mxu0 %v641
      %759 = vmatpush.msra.mxu0 %v625
      %760 = vmatpush.msra.mxu0 %v609
      %761 = vmatpush.msra.mxu0 %v593
      %762 = vmatpush.msra.mxu0 %v577
      %763 = vmatpush.msra.mxu0 %v561
      %764 = vmatpush.msra.mxu0 %v545
      %765 = vmatmul.f32.gmra.mxu0 %v709
      %v766 = vpop.f32.mrf.mxu0
      %v767 = vadd.f32 %v738, %v766
      %768 = vmatmul.f32.gmra.mxu0 %v712
      %v769 = vpop.f32.mrf.mxu0
      %v770 = vadd.f32 %v741, %v769
      %771 = vmatmul.f32.gmra.mxu0 %v715
      %v772 = vpop.f32.mrf.mxu0
      %v773 = vadd.f32 %v744, %v772
      %774 = vmatmul.f32.gmra.mxu0 %v718
      %v775 = vpop.f32.mrf.mxu0
      %v776 = vadd.f32 %v747, %v775
      %777 = vdwg.mxu0
      %778 = vmatpush.msra.mxu0 %v530
      %779 = vmatpush.msra.mxu0 %v514
      %780 = vmatpush.msra.mxu0 %v498
      %781 = vmatpush.msra.mxu0 %v482
      %782 = vmatpush.msra.mxu0 %v473
      %783 = vmatpush.msra.mxu0 %v457
      %784 = vmatpush.msra.mxu0 %v441
      %785 = vmatpush.msra.mxu0 %v425
      %786 = vmatpush.msra.mxu0 %v409
      %787 = vmatpush.msra.mxu0 %v393
      %788 = vmatpush.msra.mxu0 %v377
      %789 = vmatpush.msra.mxu0 %v361
      %790 = vmatpush.msra.mxu0 %v345
      %791 = vmatpush.msra.mxu0 %v329
      %792 = vmatpush.msra.mxu0 %v313
      %793 = vmatpush.msra.mxu0 %v297
      %794 = vmatmul.f32.gmra.mxu0 %v675
      %v795 = vpop.f32.mrf.mxu0
      %v796 = vadd.f32 %v690, %v795
      %797 = vmatmul.f32.gmra.mxu0 %v677
      %v798 = vpop.f32.mrf.mxu0
      %v799 = vadd.f32 %v695, %v798
      %800 = vmatmul.f32.gmra.mxu0 %v679
      %v801 = vpop.f32.mrf.mxu0
      %v802 = vadd.f32 %v700, %v801
      %803 = vmatmul.f32.gmra.mxu0 %v681
      %v804 = vpop.f32.mrf.mxu0
      %v805 = vadd.f32 %v705, %v804
      %806 = vdwg.mxu0
      %807 = vmatpush.msra.mxu0 0.0
      %808 = vmatpush.msra.mxu0 0.0
      %809 = vmatpush.msra.mxu0 0.0
      %810 = vmatpush.msra.mxu0 0.0
      %811 = vmatpush.msra.mxu0 0.0
      %812 = vmatpush.msra.mxu0 0.0
      %813 = vmatpush.msra.mxu0 0.0
      %814 = vmatpush.msra.mxu0 %v674
      %815 = vmatpush.msra.mxu0 %v658
      %816 = vmatpush.msra.mxu0 %v642
      %817 = vmatpush.msra.mxu0 %v626
      %818 = vmatpush.msra.mxu0 %v610
      %819 = vmatpush.msra.mxu0 %v594
      %820 = vmatpush.msra.mxu0 %v578
      %821 = vmatpush.msra.mxu0 %v562
      %822 = vmatpush.msra.mxu0 %v546
      %823 = vmatmul.f32.gmra.mxu0 %v709
      %v824 = vpop.f32.mrf.mxu0
      %v825 = vadd.f32 %v796, %v824
      %826 = vmatmul.f32.gmra.mxu0 %v712
      %v827 = vpop.f32.mrf.mxu0
      %v828 = vadd.f32 %v799, %v827
      %829 = vmatmul.f32.gmra.mxu0 %v715
      %v830 = vpop.f32.mrf.mxu0
      %v831 = vadd.f32 %v802, %v830
      %832 = vmatmul.f32.gmra.mxu0 %v718
      %v833 = vpop.f32.mrf.mxu0
      %v834 = vadd.f32 %v805, %v833
      %835 = vdwg.mxu0
      %vm836 = vcmp.ge.f32.partialorder %v767, 0.0
      %vm837 = vcmp.ge.f32.partialorder %v825, 0.0
      %vm838 = vcmp.ge.f32.partialorder %v770, 0.0
      %vm839 = vcmp.ge.f32.partialorder %v828, 0.0
      %vm840 = vcmp.ge.f32.partialorder %v773, 0.0
      %vm841 = vcmp.ge.f32.partialorder %v831, 0.0
      %vm842 = vcmp.ge.f32.partialorder %v776, 0.0
      %vm843 = vcmp.ge.f32.partialorder %v834, 0.0
      %v844 = vmul.f32 %v767, 0.1
      %v845 = vmul.f32 %v825, 0.1
      %v846 = vmul.f32 %v770, 0.1
      %v847 = vmul.f32 %v828, 0.1
      %v848 = vmul.f32 %v773, 0.1
      %v849 = vmul.f32 %v831, 0.1
      %v850 = vmul.f32 %v776, 0.1
      %v851 = vmul.f32 %v834, 0.1
      %v852 = vsel %vm836, %v767, %v844
      %v853 = vsel %vm837, %v825, %v845
      %v854 = vsel %vm838, %v770, %v846
      %v855 = vsel %vm839, %v828, %v847
      %v856 = vsel %vm840, %v773, %v848
      %v857 = vsel %vm841, %v831, %v849
      %v858 = vsel %vm842, %v776, %v850
      %v859 = vsel %vm843, %v834, %v851
      %860 = vrot.lane.b32.xlu0 %v852, 17
      %v861 = vpop.permute.xlu0 %860
      %862 = vrot.lane.b32.xlu0 %v854, 17
      %v863 = vpop.permute.xlu0 %862
      %864 = vrot.lane.b32.xlu0 %v856, 17
      %v865 = vpop.permute.xlu0 %864
      %866 = vrot.lane.b32.xlu0 %v858, 17
      %v867 = vpop.permute.xlu0 %866
      %868 = vrot.lane.b32.xlu0 %v853, 17
      %v869 = vpop.permute.xlu0 %868
      %870 = vrot.lane.b32.xlu0 %v855, 17
      %v871 = vpop.permute.xlu0 %870
      %872 = vrot.lane.b32.xlu0 %v857, 17
      %v873 = vpop.permute.xlu0 %872
      %874 = vrot.lane.b32.xlu0 %v859, 17
      %v875 = vpop.permute.xlu0 %874
      %v876 = vsel %vm382, %v861, %v869
      %v877 = vsel %vm382, %v863, %v871
      %v878 = vsel %vm382, %v865, %v873
      %v879 = vsel %vm382, %v867, %v875
      %v880 = vsel %vm382, %v869, %v861
      %v881 = vsel %vm382, %v871, %v863
      %v882 = vsel %vm382, %v873, %v865
      %v883 = vsel %vm382, %v875, %v867
      %v884 = vld [vmem:[%s6] ss:$8 sm:$0x3]
      %v886 = vperm.slane %v884, 0
      %v887 = vperm.slane %v884, 1
      %v890 = vmul.f32 %v880, %v886
      %v891 = vmul.f32 %v876, %v887
      %v892 = vmul.f32 %v881, %v886
      %v893 = vmul.f32 %v877, %v887
      %v894 = vmul.f32 %v882, %v886
      %v895 = vmul.f32 %v878, %v887
      %v896 = vmul.f32 %v883, %v886
      %v897 = vmul.f32 %v879, %v887
      %898 = vrot.lane.b32.xlu0 %v852, 16
      %v899 = vpop.permute.xlu0 %898
      %900 = vrot.lane.b32.xlu0 %v854, 16
      %v901 = vpop.permute.xlu0 %900
      %902 = vrot.lane.b32.xlu0 %v856, 16
      %v903 = vpop.permute.xlu0 %902
      %904 = vrot.lane.b32.xlu0 %v858, 16
      %v905 = vpop.permute.xlu0 %904
      %906 = vrot.lane.b32.xlu0 %v853, 16
      %v907 = vpop.permute.xlu0 %906
      %908 = vrot.lane.b32.xlu0 %v855, 16
      %v909 = vpop.permute.xlu0 %908
      %910 = vrot.lane.b32.xlu0 %v857, 16
      %v911 = vpop.permute.xlu0 %910
      %912 = vrot.lane.b32.xlu0 %v859, 16
      %v913 = vpop.permute.xlu0 %912
      %v914 = vsel %vm398, %v899, %v907
      %v915 = vsel %vm398, %v901, %v909
      %v916 = vsel %vm398, %v903, %v911
      %v917 = vsel %vm398, %v905, %v913
      %v918 = vsel %vm398, %v907, %v899
      %v919 = vsel %vm398, %v909, %v901
      %v920 = vsel %vm398, %v911, %v903
      %v921 = vsel %vm398, %v913, %v905
      %s922 = scalar_lea.vmem %s6, 1
      %v923 = vld [vmem:[%s922] ss:$8 sm:$0x3]
      %v925 = vperm.slane %v923, 0
      %v926 = vperm.slane %v923, 1
      %v929 = vmul.f32 %v918, %v925
      %v930 = vmul.f32 %v914, %v926
      %v931 = vmul.f32 %v919, %v925
      %v932 = vmul.f32 %v915, %v926
      %v933 = vmul.f32 %v920, %v925
      %v934 = vmul.f32 %v916, %v926
      %v935 = vmul.f32 %v921, %v925
      %v936 = vmul.f32 %v917, %v926
      %937 = vrot.lane.b32.xlu0 %v852, 15
      %v938 = vpop.permute.xlu0 %937
      %939 = vrot.lane.b32.xlu0 %v854, 15
      %v940 = vpop.permute.xlu0 %939
      %941 = vrot.lane.b32.xlu0 %v856, 15
      %v942 = vpop.permute.xlu0 %941
      %943 = vrot.lane.b32.xlu0 %v858, 15
      %v944 = vpop.permute.xlu0 %943
      %945 = vrot.lane.b32.xlu0 %v853, 15
      %v946 = vpop.permute.xlu0 %945
      %947 = vrot.lane.b32.xlu0 %v855, 15
      %v948 = vpop.permute.xlu0 %947
      %949 = vrot.lane.b32.xlu0 %v857, 15
      %v950 = vpop.permute.xlu0 %949
      %951 = vrot.lane.b32.xlu0 %v859, 15
      %v952 = vpop.permute.xlu0 %951
      %v953 = vsel %vm414, %v938, %v946
      %v954 = vsel %vm414, %v940, %v948
      %v955 = vsel %vm414, %v942, %v950
      %v956 = vsel %vm414, %v944, %v952
      %v957 = vsel %vm414, %v946, %v938
      %v958 = vsel %vm414, %v948, %v940
      %v959 = vsel %vm414, %v950, %v942
      %v960 = vsel %vm414, %v952, %v944
      %s961 = scalar_lea.vmem %s6, 2
      %v962 = vld [vmem:[%s961] ss:$8 sm:$0x3]
      %v964 = vperm.slane %v962, 0
      %v965 = vperm.slane %v962, 1
      %v968 = vmul.f32 %v957, %v964
      %v969 = vmul.f32 %v953, %v965
      %v970 = vmul.f32 %v958, %v964
      %v971 = vmul.f32 %v954, %v965
      %v972 = vmul.f32 %v959, %v964
      %v973 = vmul.f32 %v955, %v965
      %v974 = vmul.f32 %v960, %v964
      %v975 = vmul.f32 %v956, %v965
      %976 = vrot.lane.b32.xlu0 %v852, 1
      %v977 = vpop.permute.xlu0 %976
      %978 = vrot.lane.b32.xlu0 %v854, 1
      %v979 = vpop.permute.xlu0 %978
      %980 = vrot.lane.b32.xlu0 %v856, 1
      %v981 = vpop.permute.xlu0 %980
      %982 = vrot.lane.b32.xlu0 %v858, 1
      %v983 = vpop.permute.xlu0 %982
      %984 = vrot.lane.b32.xlu0 %v853, 1
      %v985 = vpop.permute.xlu0 %984
      %986 = vrot.lane.b32.xlu0 %v855, 1
      %v987 = vpop.permute.xlu0 %986
      %988 = vrot.lane.b32.xlu0 %v857, 1
      %v989 = vpop.permute.xlu0 %988
      %990 = vrot.lane.b32.xlu0 %v859, 1
      %v991 = vpop.permute.xlu0 %990
      %v992 = vsel %vm462, %v977, %v985
      %v993 = vsel %vm462, %v979, %v987
      %v994 = vsel %vm462, %v981, %v989
      %v995 = vsel %vm462, %v983, %v991
      %v996 = vsel %vm462, %v985, %v977
      %v997 = vsel %vm462, %v987, %v979
      %v998 = vsel %vm462, %v989, %v981
      %v999 = vsel %vm462, %v991, %v983
      %s1000 = scalar_lea.vmem %s6, 3
      %v1001 = vld [vmem:[%s1000] ss:$8 sm:$0x3]
      %v1003 = vperm.slane %v1001, 0
      %v1004 = vperm.slane %v1001, 1
      %v1007 = vmul.f32 %v996, %v1003
      %v1008 = vmul.f32 %v992, %v1004
      %v1009 = vmul.f32 %v997, %v1003
      %v1010 = vmul.f32 %v993, %v1004
      %v1011 = vmul.f32 %v998, %v1003
      %v1012 = vmul.f32 %v994, %v1004
      %v1013 = vmul.f32 %v999, %v1003
      %v1014 = vmul.f32 %v995, %v1004
      %s1015 = scalar_lea.vmem %s6, 4
      %v1016 = vld [vmem:[%s1015] ss:$8 sm:$0x3]
      %v1018 = vperm.slane %v1016, 0
      %v1019 = vperm.slane %v1016, 1
      %v1022 = vmul.f32 %v852, %v1018
      %v1023 = vmul.f32 %v853, %v1019
      %v1024 = vmul.f32 %v854, %v1018
      %v1025 = vmul.f32 %v855, %v1019
      %v1026 = vmul.f32 %v856, %v1018
      %v1027 = vmul.f32 %v857, %v1019
      %v1028 = vmul.f32 %v858, %v1018
      %v1029 = vmul.f32 %v859, %v1019
      %1030 = vrot.lane.b32.xlu0 %v852, 127
      %v1031 = vpop.permute.xlu0 %1030
      %1032 = vrot.lane.b32.xlu0 %v854, 127
      %v1033 = vpop.permute.xlu0 %1032
      %1034 = vrot.lane.b32.xlu0 %v856, 127
      %v1035 = vpop.permute.xlu0 %1034
      %1036 = vrot.lane.b32.xlu0 %v858, 127
      %v1037 = vpop.permute.xlu0 %1036
      %1038 = vrot.lane.b32.xlu0 %v853, 127
      %v1039 = vpop.permute.xlu0 %1038
      %1040 = vrot.lane.b32.xlu0 %v855, 127
      %v1041 = vpop.permute.xlu0 %1040
      %1042 = vrot.lane.b32.xlu0 %v857, 127
      %v1043 = vpop.permute.xlu0 %1042
      %1044 = vrot.lane.b32.xlu0 %v859, 127
      %v1045 = vpop.permute.xlu0 %1044
      %v1046 = vsel %vm487, %v1031, %v1039
      %v1047 = vsel %vm487, %v1033, %v1041
      %v1048 = vsel %vm487, %v1035, %v1043
      %v1049 = vsel %vm487, %v1037, %v1045
      %v1050 = vsel %vm487, %v1039, %v1031
      %v1051 = vsel %vm487, %v1041, %v1033
      %v1052 = vsel %vm487, %v1043, %v1035
      %v1053 = vsel %vm487, %v1045, %v1037
      %s1054 = scalar_lea.vmem %s6, 5
      %v1055 = vld [vmem:[%s1054] ss:$8 sm:$0x3]
      %v1057 = vperm.slane %v1055, 0
      %v1058 = vperm.slane %v1055, 1
      %v1061 = vmul.f32 %v1046, %v1057
      %v1062 = vmul.f32 %v1050, %v1058
      %v1063 = vmul.f32 %v1047, %v1057
      %v1064 = vmul.f32 %v1051, %v1058
      %v1065 = vmul.f32 %v1048, %v1057
      %v1066 = vmul.f32 %v1052, %v1058
      %v1067 = vmul.f32 %v1049, %v1057
      %v1068 = vmul.f32 %v1053, %v1058
      %1069 = vrot.lane.b32.xlu0 %v852, 113
      %v1070 = vpop.permute.xlu0 %1069
      %1071 = vrot.lane.b32.xlu0 %v854, 113
      %v1072 = vpop.permute.xlu0 %1071
      %1073 = vrot.lane.b32.xlu0 %v856, 113
      %v1074 = vpop.permute.xlu0 %1073
      %1075 = vrot.lane.b32.xlu0 %v858, 113
      %v1076 = vpop.permute.xlu0 %1075
      %1077 = vrot.lane.b32.xlu0 %v853, 113
      %v1078 = vpop.permute.xlu0 %1077
      %1079 = vrot.lane.b32.xlu0 %v855, 113
      %v1080 = vpop.permute.xlu0 %1079
      %1081 = vrot.lane.b32.xlu0 %v857, 113
      %v1082 = vpop.permute.xlu0 %1081
      %1083 = vrot.lane.b32.xlu0 %v859, 113
      %v1084 = vpop.permute.xlu0 %1083
      %v1085 = vsel %vm535, %v1070, %v1078
      %v1086 = vsel %vm535, %v1072, %v1080
      %v1087 = vsel %vm535, %v1074, %v1082
      %v1088 = vsel %vm535, %v1076, %v1084
      %v1089 = vsel %vm535, %v1078, %v1070
      %v1090 = vsel %vm535, %v1080, %v1072
      %v1091 = vsel %vm535, %v1082, %v1074
      %v1092 = vsel %vm535, %v1084, %v1076
      %s1093 = scalar_lea.vmem %s6, 6
      %v1094 = vld [vmem:[%s1093] ss:$8 sm:$0x3]
      %v1096 = vperm.slane %v1094, 0
      %v1097 = vperm.slane %v1094, 1
      %v1100 = vmul.f32 %v1085, %v1096
      %v1101 = vmul.f32 %v1089, %v1097
      %v1102 = vmul.f32 %v1086, %v1096
      %v1103 = vmul.f32 %v1090, %v1097
      %v1104 = vmul.f32 %v1087, %v1096
      %v1105 = vmul.f32 %v1091, %v1097
      %v1106 = vmul.f32 %v1088, %v1096
      %v1107 = vmul.f32 %v1092, %v1097
      %1108 = vrot.lane.b32.xlu0 %v852, 112
      %v1109 = vpop.permute.xlu0 %1108
      %1110 = vrot.lane.b32.xlu0 %v854, 112
      %v1111 = vpop.permute.xlu0 %1110
      %1112 = vrot.lane.b32.xlu0 %v856, 112
      %v1113 = vpop.permute.xlu0 %1112
      %1114 = vrot.lane.b32.xlu0 %v858, 112
      %v1115 = vpop.permute.xlu0 %1114
      %1116 = vrot.lane.b32.xlu0 %v853, 112
      %v1117 = vpop.permute.xlu0 %1116
      %1118 = vrot.lane.b32.xlu0 %v855, 112
      %v1119 = vpop.permute.xlu0 %1118
      %1120 = vrot.lane.b32.xlu0 %v857, 112
      %v1121 = vpop.permute.xlu0 %1120
      %1122 = vrot.lane.b32.xlu0 %v859, 112
      %v1123 = vpop.permute.xlu0 %1122
      %v1124 = vsel %vm551, %v1109, %v1117
      %v1125 = vsel %vm551, %v1111, %v1119
      %v1126 = vsel %vm551, %v1113, %v1121
      %v1127 = vsel %vm551, %v1115, %v1123
      %v1128 = vsel %vm551, %v1117, %v1109
      %v1129 = vsel %vm551, %v1119, %v1111
      %v1130 = vsel %vm551, %v1121, %v1113
      %v1131 = vsel %vm551, %v1123, %v1115
      %s1132 = scalar_lea.vmem %s6, 7
      %v1133 = vld [vmem:[%s1132] ss:$8 sm:$0x3]
      %v1135 = vperm.slane %v1133, 0
      %v1136 = vperm.slane %v1133, 1
      %v1139 = vmul.f32 %v1124, %v1135
      %v1140 = vmul.f32 %v1128, %v1136
      %v1141 = vmul.f32 %v1125, %v1135
      %v1142 = vmul.f32 %v1129, %v1136
      %v1143 = vmul.f32 %v1126, %v1135
      %v1144 = vmul.f32 %v1130, %v1136
      %v1145 = vmul.f32 %v1127, %v1135
      %v1146 = vmul.f32 %v1131, %v1136
      %1147 = vrot.lane.b32.xlu0 %v852, 111
      %v1148 = vpop.permute.xlu0 %1147
      %1149 = vrot.lane.b32.xlu0 %v854, 111
      %v1150 = vpop.permute.xlu0 %1149
      %1151 = vrot.lane.b32.xlu0 %v856, 111
      %v1152 = vpop.permute.xlu0 %1151
      %1153 = vrot.lane.b32.xlu0 %v858, 111
      %v1154 = vpop.permute.xlu0 %1153
      %1155 = vrot.lane.b32.xlu0 %v853, 111
      %v1156 = vpop.permute.xlu0 %1155
      %1157 = vrot.lane.b32.xlu0 %v855, 111
      %v1158 = vpop.permute.xlu0 %1157
      %1159 = vrot.lane.b32.xlu0 %v857, 111
      %v1160 = vpop.permute.xlu0 %1159
      %1161 = vrot.lane.b32.xlu0 %v859, 111
      %v1162 = vpop.permute.xlu0 %1161
      %v1163 = vsel %vm567, %v1148, %v1156
      %v1164 = vsel %vm567, %v1150, %v1158
      %v1165 = vsel %vm567, %v1152, %v1160
      %v1166 = vsel %vm567, %v1154, %v1162
      %v1167 = vsel %vm567, %v1156, %v1148
      %v1168 = vsel %vm567, %v1158, %v1150
      %v1169 = vsel %vm567, %v1160, %v1152
      %v1170 = vsel %vm567, %v1162, %v1154
      %s1171 = scalar_lea.vmem %s6, 16
      %v1172 = vld [vmem:[%s1171] ss:$8 sm:$0x3]
      %v1174 = vperm.slane %v1172, 0
      %v1175 = vperm.slane %v1172, 1
      %v1178 = vmul.f32 %v1163, %v1174
      %v1179 = vmul.f32 %v1167, %v1175
      %v1180 = vmul.f32 %v1164, %v1174
      %v1181 = vmul.f32 %v1168, %v1175
      %v1182 = vmul.f32 %v1165, %v1174
      %v1183 = vmul.f32 %v1169, %v1175
      %v1184 = vmul.f32 %v1166, %v1174
      %v1185 = vmul.f32 %v1170, %v1175
      %v1186 = vld [vmem:[%s3] sm:$0xff]
      %v1187 = vld [vmem:[%s3 + $0x8] sm:$0xff]
      %v1188 = vld [vmem:[%s3 + $0x10] sm:$0xff]
      %v1189 = vld [vmem:[%s3 + $0x18] sm:$0xff]
      %v1190 = vld [vmem:[%s3 + $0x20] sm:$0xff]
      %v1191 = vld [vmem:[%s3 + $0x28] sm:$0xff]
      %v1192 = vld [vmem:[%s3 + $0x30] sm:$0xff]
      %v1193 = vld [vmem:[%s3 + $0x38] sm:$0xff]
      %v1194 = vld [vmem:[%s3 + $0x40] sm:$0xff]
      %v1195 = vld [vmem:[%s3 + $0x48] sm:$0xff]
      %v1196 = vld [vmem:[%s3 + $0x50] sm:$0xff]
      %v1197 = vld [vmem:[%s3 + $0x58] sm:$0xff]
      %v1198 = vld [vmem:[%s4] sm:$0xff]
      %v1199 = vld [vmem:[%s4 + $0x8] sm:$0xff]
      %v1200 = vld [vmem:[%s4 + $0x10] sm:$0xff]
      %v1201 = vld [vmem:[%s4 + $0x18] sm:$0xff]
      %1203 = vset.pattern.permute.xlu0 0
      %1204 = vperm.xlu0 %1203, %v1198
      %v1205 = vpop.permute.xlu0 %1204
      %1208 = vset.pattern.permute.xlu0 0
      %1209 = vperm.xlu0 %1208, %v1199
      %v1210 = vpop.permute.xlu0 %1209
      %1213 = vset.pattern.permute.xlu0 0
      %1214 = vperm.xlu0 %1213, %v1200
      %v1215 = vpop.permute.xlu0 %1214
      %1218 = vset.pattern.permute.xlu0 0
      %1219 = vperm.xlu0 %1218, %v1201
      %v1220 = vpop.permute.xlu0 %1219
      %vm1222 = vcmask 261120
      %v1224 = vsel %vm1222, %v1188, 0
      %v1227 = vsel %vm1222, %v1191, 0
      %v1230 = vsel %vm1222, %v1194, 0
      %v1233 = vsel %vm1222, %v1197, 0
      %1235 = vmatpush.msra.mxu0 %v1013
      %1236 = vmatpush.msra.mxu0 %v1011
      %1237 = vmatpush.msra.mxu0 %v1009
      %1238 = vmatpush.msra.mxu0 %v1007
      %1239 = vmatpush.msra.mxu0 %v974
      %1240 = vmatpush.msra.mxu0 %v972
      %1241 = vmatpush.msra.mxu0 %v970
      %1242 = vmatpush.msra.mxu0 %v968
      %1243 = vmatpush.msra.mxu0 %v935
      %1244 = vmatpush.msra.mxu0 %v933
      %1245 = vmatpush.msra.mxu0 %v931
      %1246 = vmatpush.msra.mxu0 %v929
      %1247 = vmatpush.msra.mxu0 %v896
      %1248 = vmatpush.msra.mxu0 %v894
      %1249 = vmatpush.msra.mxu0 %v892
      %1250 = vmatpush.msra.mxu0 %v890
      %1251 = vmatmul.f32.gmra.mxu0 %v1186
      %v1252 = vpop.f32.mrf.mxu0
      %v1253 = vadd.f32 %v1205, %v1252
      %1254 = vmatmul.f32.gmra.mxu0 %v1189
      %v1255 = vpop.f32.mrf.mxu0
      %v1256 = vadd.f32 %v1210, %v1255
      %1257 = vmatmul.f32.gmra.mxu0 %v1192
      %v1258 = vpop.f32.mrf.mxu0
      %v1259 = vadd.f32 %v1215, %v1258
      %1260 = vmatmul.f32.gmra.mxu0 %v1195
      %v1261 = vpop.f32.mrf.mxu0
      %v1262 = vadd.f32 %v1220, %v1261
      %1263 = vdwg.mxu0
      %1264 = vmatpush.msra.mxu0 %v1145
      %1265 = vmatpush.msra.mxu0 %v1143
      %1266 = vmatpush.msra.mxu0 %v1141
      %1267 = vmatpush.msra.mxu0 %v1139
      %1268 = vmatpush.msra.mxu0 %v1106
      %1269 = vmatpush.msra.mxu0 %v1104
      %1270 = vmatpush.msra.mxu0 %v1102
      %1271 = vmatpush.msra.mxu0 %v1100
      %1272 = vmatpush.msra.mxu0 %v1067
      %1273 = vmatpush.msra.mxu0 %v1065
      %1274 = vmatpush.msra.mxu0 %v1063
      %1275 = vmatpush.msra.mxu0 %v1061
      %1276 = vmatpush.msra.mxu0 %v1028
      %1277 = vmatpush.msra.mxu0 %v1026
      %1278 = vmatpush.msra.mxu0 %v1024
      %1279 = vmatpush.msra.mxu0 %v1022
      %1280 = vmatmul.f32.gmra.mxu0 %v1187
      %v1281 = vpop.f32.mrf.mxu0
      %v1282 = vadd.f32 %v1253, %v1281
      %1283 = vmatmul.f32.gmra.mxu0 %v1190
      %v1284 = vpop.f32.mrf.mxu0
      %v1285 = vadd.f32 %v1256, %v1284
      %1286 = vmatmul.f32.gmra.mxu0 %v1193
      %v1287 = vpop.f32.mrf.mxu0
      %v1288 = vadd.f32 %v1259, %v1287
      %1289 = vmatmul.f32.gmra.mxu0 %v1196
      %v1290 = vpop.f32.mrf.mxu0
      %v1291 = vadd.f32 %v1262, %v1290
      %1292 = vdwg.mxu0
      %1293 = vmatpush.msra.mxu0 0.0
      %1294 = vmatpush.msra.mxu0 0.0
      %1295 = vmatpush.msra.mxu0 0.0
      %1296 = vmatpush.msra.mxu0 0.0
      %1297 = vmatpush.msra.mxu0 0.0
      %1298 = vmatpush.msra.mxu0 0.0
      %1299 = vmatpush.msra.mxu0 0.0
      %1300 = vmatpush.msra.mxu0 0.0
      %1301 = vmatpush.msra.mxu0 0.0
      %1302 = vmatpush.msra.mxu0 0.0
      %1303 = vmatpush.msra.mxu0 0.0
      %1304 = vmatpush.msra.mxu0 0.0
      %1305 = vmatpush.msra.mxu0 %v1184
      %1306 = vmatpush.msra.mxu0 %v1182
      %1307 = vmatpush.msra.mxu0 %v1180
      %1308 = vmatpush.msra.mxu0 %v1178
      %1309 = vmatmul.f32.gmra.mxu0 %v1224
      %v1310 = vpop.f32.mrf.mxu0
      %v1311 = vadd.f32 %v1282, %v1310
      %1312 = vmatmul.f32.gmra.mxu0 %v1227
      %v1313 = vpop.f32.mrf.mxu0
      %v1314 = vadd.f32 %v1285, %v1313
      %1315 = vmatmul.f32.gmra.mxu0 %v1230
      %v1316 = vpop.f32.mrf.mxu0
      %v1317 = vadd.f32 %v1288, %v1316
      %1318 = vmatmul.f32.gmra.mxu0 %v1233
      %v1319 = vpop.f32.mrf.mxu0
      %v1320 = vadd.f32 %v1291, %v1319
      %1321 = vdwg.mxu0
      %1322 = vmatpush.msra.mxu0 %v1014
      %1323 = vmatpush.msra.mxu0 %v1012
      %1324 = vmatpush.msra.mxu0 %v1010
      %1325 = vmatpush.msra.mxu0 %v1008
      %1326 = vmatpush.msra.mxu0 %v975
      %1327 = vmatpush.msra.mxu0 %v973
      %1328 = vmatpush.msra.mxu0 %v971
      %1329 = vmatpush.msra.mxu0 %v969
      %1330 = vmatpush.msra.mxu0 %v936
      %1331 = vmatpush.msra.mxu0 %v934
      %1332 = vmatpush.msra.mxu0 %v932
      %1333 = vmatpush.msra.mxu0 %v930
      %1334 = vmatpush.msra.mxu0 %v897
      %1335 = vmatpush.msra.mxu0 %v895
      %1336 = vmatpush.msra.mxu0 %v893
      %1337 = vmatpush.msra.mxu0 %v891
      %1338 = vmatmul.f32.gmra.mxu0 %v1186
      %v1339 = vpop.f32.mrf.mxu0
      %v1340 = vadd.f32 %v1205, %v1339
      %1341 = vmatmul.f32.gmra.mxu0 %v1189
      %v1342 = vpop.f32.mrf.mxu0
      %v1343 = vadd.f32 %v1210, %v1342
      %1344 = vmatmul.f32.gmra.mxu0 %v1192
      %v1345 = vpop.f32.mrf.mxu0
      %v1346 = vadd.f32 %v1215, %v1345
      %1347 = vmatmul.f32.gmra.mxu0 %v1195
      %v1348 = vpop.f32.mrf.mxu0
      %v1349 = vadd.f32 %v1220, %v1348
      %1350 = vdwg.mxu0
      %1351 = vmatpush.msra.mxu0 %v1146
      %1352 = vmatpush.msra.mxu0 %v1144
      %1353 = vmatpush.msra.mxu0 %v1142
      %1354 = vmatpush.msra.mxu0 %v1140
      %1355 = vmatpush.msra.mxu0 %v1107
      %1356 = vmatpush.msra.mxu0 %v1105
      %1357 = vmatpush.msra.mxu0 %v1103
      %1358 = vmatpush.msra.mxu0 %v1101
      %1359 = vmatpush.msra.mxu0 %v1068
      %1360 = vmatpush.msra.mxu0 %v1066
      %1361 = vmatpush.msra.mxu0 %v1064
      %1362 = vmatpush.msra.mxu0 %v1062
      %1363 = vmatpush.msra.mxu0 %v1029
      %1364 = vmatpush.msra.mxu0 %v1027
      %1365 = vmatpush.msra.mxu0 %v1025
      %1366 = vmatpush.msra.mxu0 %v1023
      %1367 = vmatmul.f32.gmra.mxu0 %v1187
      %v1368 = vpop.f32.mrf.mxu0
      %v1369 = vadd.f32 %v1340, %v1368
      %1370 = vmatmul.f32.gmra.mxu0 %v1190
      %v1371 = vpop.f32.mrf.mxu0
      %v1372 = vadd.f32 %v1343, %v1371
      %1373 = vmatmul.f32.gmra.mxu0 %v1193
      %v1374 = vpop.f32.mrf.mxu0
      %v1375 = vadd.f32 %v1346, %v1374
      %1376 = vmatmul.f32.gmra.mxu0 %v1196
      %v1377 = vpop.f32.mrf.mxu0
      %v1378 = vadd.f32 %v1349, %v1377
      %1379 = vdwg.mxu0
      %1380 = vmatpush.msra.mxu0 0.0
      %1381 = vmatpush.msra.mxu0 0.0
      %1382 = vmatpush.msra.mxu0 0.0
      %1383 = vmatpush.msra.mxu0 0.0
      %1384 = vmatpush.msra.mxu0 0.0
      %1385 = vmatpush.msra.mxu0 0.0
      %1386 = vmatpush.msra.mxu0 0.0
      %1387 = vmatpush.msra.mxu0 0.0
      %1388 = vmatpush.msra.mxu0 0.0
      %1389 = vmatpush.msra.mxu0 0.0
      %1390 = vmatpush.msra.mxu0 0.0
      %1391 = vmatpush.msra.mxu0 0.0
      %1392 = vmatpush.msra.mxu0 %v1185
      %1393 = vmatpush.msra.mxu0 %v1183
      %1394 = vmatpush.msra.mxu0 %v1181
      %1395 = vmatpush.msra.mxu0 %v1179
      %1396 = vmatmul.f32.gmra.mxu0 %v1224
      %v1397 = vpop.f32.mrf.mxu0
      %v1398 = vadd.f32 %v1369, %v1397
      %1399 = vmatmul.f32.gmra.mxu0 %v1227
      %v1400 = vpop.f32.mrf.mxu0
      %v1401 = vadd.f32 %v1372, %v1400
      %1402 = vmatmul.f32.gmra.mxu0 %v1230
      %v1403 = vpop.f32.mrf.mxu0
      %v1404 = vadd.f32 %v1375, %v1403
      %1405 = vmatmul.f32.gmra.mxu0 %v1233
      %v1406 = vpop.f32.mrf.mxu0
      %v1407 = vadd.f32 %v1378, %v1406
      %1408 = vdwg.mxu0
      %vm1409 = vcmp.ge.f32.partialorder %v1311, 0.0
      %vm1410 = vcmp.ge.f32.partialorder %v1398, 0.0
      %vm1411 = vcmp.ge.f32.partialorder %v1314, 0.0
      %vm1412 = vcmp.ge.f32.partialorder %v1401, 0.0
      %vm1413 = vcmp.ge.f32.partialorder %v1317, 0.0
      %vm1414 = vcmp.ge.f32.partialorder %v1404, 0.0
      %vm1415 = vcmp.ge.f32.partialorder %v1320, 0.0
      %vm1416 = vcmp.ge.f32.partialorder %v1407, 0.0
      %v1417 = vmul.f32 %v1311, 0.1
      %v1418 = vmul.f32 %v1398, 0.1
      %v1419 = vmul.f32 %v1314, 0.1
      %v1420 = vmul.f32 %v1401, 0.1
      %v1421 = vmul.f32 %v1317, 0.1
      %v1422 = vmul.f32 %v1404, 0.1
      %v1423 = vmul.f32 %v1320, 0.1
      %v1424 = vmul.f32 %v1407, 0.1
      %v1425 = vsel %vm1409, %v1311, %v1417
      %v1426 = vsel %vm1410, %v1398, %v1418
      %v1427 = vsel %vm1411, %v1314, %v1419
      %v1428 = vsel %vm1412, %v1401, %v1420
      %v1429 = vsel %vm1413, %v1317, %v1421
      %v1430 = vsel %vm1414, %v1404, %v1422
      %v1431 = vsel %vm1415, %v1320, %v1423
      %v1432 = vsel %vm1416, %v1407, %v1424
      %1433 = vst [vmem:[%s278] sm:$0xff] %v1425
      %1434 = vst [vmem:[%s278 + $0x8] sm:$0xff] %v1426
      %1435 = vst [vmem:[%s278 + $0x10] sm:$0xff] %v1427
      %1436 = vst [vmem:[%s278 + $0x18] sm:$0xff] %v1428
      %1437 = vst [vmem:[%s278 + $0x20] sm:$0xff] %v1429
      %1438 = vst [vmem:[%s278 + $0x28] sm:$0xff] %v1430
      %1439 = vst [vmem:[%s278 + $0x30] sm:$0xff] %v1431
      %1440 = vst [vmem:[%s278 + $0x38] sm:$0xff] %v1432
      %p1441 = scmp.lt.s32.totalorder %s18, 1
      %s1442 = scalar_select %p1441, %s18, 1
      %s1443 = smul.addr %s1442, 8
      %s1444 = smul.addr %s1443, 8
      %s1445 = scalar_lea.vmem %s7, %s1444
      // Predicated region
      $region49: #{sfe_forward.1} parent=47 // pred_check
        %p1446 = pneg %p188
      $region50: #{sfe_forward.1} parent=47 // pred_check_branch
        %1448 = sbr.rel (%p1446) target = $region52
      $region51: #{sfe_forward.1} parent=47 // pred_region
        _
      $region52: #{sfe_forward.1} parent=47 // pred_fallthru
        _
    $region48: #{sfe_forward.1} parent=5 // pred_fallthru
      _
    %p1449 = scmp.le.s32.totalorder 2, %s13
    // Predicated region
    $region53: #{sfe_forward.1} parent=5 // pred_check
      %p1450 = pneg %p1449
    $region54: #{sfe_forward.1} parent=5 // pred_check_branch
      %1452 = sbr.rel (%p1450) target = $region56
    $region55: #{sfe_forward.1} parent=5 // pred_region
      %s1453 = ssub.s32 %s13, 2
      // Predicated region
      $region57: #{sfe_forward.1} parent=55 // pred_check
        %p1454 = pneg %p194
      $region58: #{sfe_forward.1} parent=55 // pred_check_branch
        %1456 = sbr.rel (%p1454) target = $region60
      $region59: #{sfe_forward.1} parent=55 // pred_region
        %p1457 = scmp.lt.s32.totalorder %s19, 1
        %s1458 = scalar_select %p1457, %s19, 1
        %s1459 = smul.addr %s1458, 8
        %s1460 = smul.addr %s1459, 8
        %s1461 = scalar_lea.vmem %s7, %s1460
      $region60: #{sfe_forward.1} parent=55 // pred_fallthru
        _
    $region56: #{sfe_forward.1} parent=5 // pred_fallthru
      _
  $region6: #{sfe_forward.1} parent=0 // loop_footer
    %s17 = sadd.s32 1, %s13
  $region7: #{sfe_forward.1} parent=0 // loop_footer_branch
    %12 = sbr.rel target = $region3
  $region8: #{sfe_forward.1} parent=0 // loop_exit
    _

</llo_original>
